<compile_context>
chip_gen: v7x
topology: tpu7x:2x2x1
jax: 0.10.0
libtpu: 0.0.40
codegen_flags: <defaults>
</compile_context>

<pallas_src>
import functools

import jax
import jax.numpy as jnp
from jax.experimental import pallas as pl
from jax.experimental.pallas import tpu as pltpu

KSIZE = 7
PAD = 3  # padding = 3 for kernel_size == 7


def _spatial_attn_kernel(wt_ref, bn_ref, col_ref, x_ref, o_ref,
                         maps_ref, shift_ref, *, W, start):
    # wt_ref   : VMEM (2, 128) f32  -- conv weights, [channel, ki*7+kj] (49 valid lanes)
    # bn_ref   : SMEM (2,)     f32  -- folded BN (scale, shift)
    # col_ref  : VMEM (2, HWp) i32  -- j = p % W for flattened position p (both rows equal)
    # x_ref    : VMEM (C, HWp)      -- lane-dense input block (batch squeezed)
    # o_ref    : VMEM (C, HWp)
    # maps_ref : VMEM (2, start+HWp+start) f32 -- fused (avg, max) maps, zeroed slack
    # shift_ref: VMEM (2, start+HWp+start) f32 -- per-dj shifted/masked copy, zeroed slack
    C, HWp = x_ref.shape
    interior = slice(start, start + HWp)

    # 1) fused channel mean / max from a single read of x_ref.
    xv = x_ref[...]
    ssum = jnp.sum(xv.astype(jnp.float32), axis=0, keepdims=True)   # (1, HWp)
    mx = jnp.max(xv, axis=0, keepdims=True).astype(jnp.float32)     # (1, HWp)
    avg = ssum * jnp.float32(1.0 / C)

    # 2) zero the slack borders (no reliance on uninitialized/stale VMEM; also
    #    replaces row-validity masks), then stage the fused maps lane-aligned.
    zslack = jnp.zeros((2, start), jnp.float32)
    maps_ref[:, 0:start] = zslack
    maps_ref[:, start + HWp:] = zslack
    shift_ref[:, 0:start] = zslack
    shift_ref[:, start + HWp:] = zslack
    maps_ref[:, interior] = jnp.concatenate([avg, mx], axis=0)       # (2, HWp)

    wt = wt_ref[...]            # (2, 128) f32
    col = col_ref[...]          # (2, HWp) i32

    # 3) 7x7 conv: per dj build one column-masked dj-shifted padded copy, then
    #    the 7 di taps are pure mul+add slices at di*W offsets.
    acc = jnp.zeros((2, HWp), jnp.float32)
    for kj in range(KSIZE):
        dj = kj - PAD
        col_ok = (col + dj >= 0) & (col + dj < W)                    # (2, HWp)
        shift_ref[:, interior] = jnp.where(
            col_ok, maps_ref[:, start + dj:start + dj + HWp], 0.0)
        for ki in range(KSIZE):
            di = ki - PAD
            t = ki * KSIZE + kj
            s0 = start + di * W
            acc = acc + wt[:, t:t + 1] * shift_ref[:, s0:s0 + HWp]

    conv = acc[0:1, :] + acc[1:2, :]                                 # (1, HWp)

    # 4) folded BatchNorm (eval mode) + sigmoid gate.
    gate = jax.nn.sigmoid(conv * bn_ref[0] + bn_ref[1])

    # 5) re-read x_ref (resident in VMEM) for the broadcast gating multiply.
    o_ref[...] = (x_ref[...] * gate.astype(x_ref.dtype)).astype(o_ref.dtype)


@jax.jit
def spatial_attention(x, conv_w, bn_scale, bn_shift):
    """x: (N, C, H, W). conv_w: (1, 2, 7, 7). Returns x * sigmoid(bn(conv(cat(mean,max))))."""
    N, C, H, W = x.shape
    HW = H * W
    HWp = ((HW + 127) // 128) * 128               # lane-dense spatial dim
    # 128-aligned slack on each side of the staged maps; must cover 3*W + 3.
    start = ((PAD * W + PAD + 127) // 128) * 128
    scratch_len = start + HWp + start

    # Conv weights as a (2, 128) lane-padded tile: column t = (w_avg, w_max) of tap t.
    w_pairs = conv_w.reshape(2, KSIZE * KSIZE).astype(jnp.float32)
    w_tile = jnp.zeros((2, 128), jnp.float32).at[:, :KSIZE * KSIZE].set(w_pairs)
    bn = jnp.stack([jnp.asarray(bn_scale, jnp.float32),
                    jnp.asarray(bn_shift, jnp.float32)])             # (2,)

    col_ids = jnp.broadcast_to(
        (jnp.arange(HWp, dtype=jnp.int32) % W)[None, :], (2, HWp))

    x2 = x.reshape(N, C, HW)   # free: contiguous NCHW -> lane-dense (N, C, H*W)
    if HWp != HW:              # zero-pad so staged maps are 0 in the pad columns
        x2 = jnp.pad(x2, ((0, 0), (0, 0), (0, HWp - HW)))

    kernel = functools.partial(_spatial_attn_kernel, W=W, start=start)

    # Explicit scoped-VMEM budget: double-buffered in+out blocks + scratch + headroom.
    est = (4 * C * HWp * x.dtype.itemsize          # x + out, double-buffered
           + 2 * 2 * scratch_len * 4               # two (2, scratch_len) f32 scratches
           + 2 * HWp * 4 + (1 << 20))              # col ids + margin
    vmem_limit = int(min(128 << 20, max(32 << 20, 2 * est)))

    out2 = pl.pallas_call(
        kernel,
        out_shape=jax.ShapeDtypeStruct((N, C, HWp), x.dtype),
        grid=(N,),
        in_specs=[
            pl.BlockSpec((2, 128), lambda n: (0, 0)),              # conv weight tile
            pl.BlockSpec(memory_space=pltpu.MemorySpace.SMEM),     # folded BN params
            pl.BlockSpec((2, HWp), lambda n: (0, 0)),              # column ids (resident)
            pl.BlockSpec((None, C, HWp), lambda n: (n, 0, 0)),     # x, batch squeezed
        ],
        out_specs=pl.BlockSpec((None, C, HWp), lambda n: (n, 0, 0)),
        scratch_shapes=[
            pltpu.VMEM((2, scratch_len), jnp.float32),             # fused avg/max maps
            pltpu.VMEM((2, scratch_len), jnp.float32),             # dj-shifted masked copy
        ],
        compiler_params=pltpu.CompilerParams(
            dimension_semantics=("parallel",),
            vmem_limit_bytes=vmem_limit),
    )(w_tile, bn, col_ids, x2)

    if HWp != HW:
        out2 = out2[:, :, :HW]
    return out2.reshape(N, C, H, W)


def _reference(x, conv_w, bn_scale, bn_shift):
    """Pure-JAX reference matching the PyTorch forward (BN in eval mode)."""
    avg = jnp.mean(x, axis=1, keepdims=True)
    mx = jnp.max(x, axis=1, keepdims=True)
    cat = jnp.concatenate([avg, mx], axis=1)                        # (N, 2, H, W)
    conv = jax.lax.conv_general_dilated(
        cat, conv_w, window_strides=(1, 1), padding=[(PAD, PAD), (PAD, PAD)],
        dimension_numbers=("NCHW", "OIHW", "NCHW"))
    out = conv * bn_scale + bn_shift
    return x * jax.nn.sigmoid(out)


if __name__ == "__main__":
    key = jax.random.PRNGKey(0)
    kx, kw = jax.random.split(key)

    N, C, H, W = 2, 4, 16, 16
    x = jax.random.normal(kx, (N, C, H, W), dtype=jnp.float32)

    # Deterministic parameter init (Conv2d(2, 1, 7, padding=3, bias=False)).
    fan_in = 2 * KSIZE * KSIZE
    bound = 1.0 / (fan_in ** 0.5)
    conv_w = jax.random.uniform(kw, (1, 2, KSIZE, KSIZE),
                                minval=-bound, maxval=bound, dtype=jnp.float32)

    # BatchNorm2d(1) in eval mode: gamma=1, beta=0, running_mean=0, running_var=1.
    gamma, beta, run_mean, run_var, eps = 1.0, 0.0, 0.0, 1.0, 1e-5
    bn_scale = jnp.float32(gamma / (run_var + eps) ** 0.5)
    bn_shift = jnp.float32(beta - run_mean * gamma / (run_var + eps) ** 0.5)

    out = spatial_attention(x, conv_w, bn_scale, bn_shift)
    jax.block_until_ready(out)

    ref = _reference(x, conv_w, bn_scale, bn_shift)
    assert out.shape == x.shape
    assert jnp.allclose(out, ref, atol=1e-5, rtol=1e-5), "mismatch vs reference"

    print("KERNEL_OK")
</pallas_src>

<mosaic_0001>
module attributes {stable_mosaic.version = 11 : i64} {
  func.func @_spatial_attn_kernel(%arg0: i32, %arg1: memref<2x128xf32, #tpu.memory_space<vmem>>, %arg2: memref<2xf32, #tpu.memory_space<smem>>, %arg3: memref<2x256xi32, #tpu.memory_space<vmem>>, %arg4: memref<1x4x256xf32, #tpu.memory_space<vmem>>, %arg5: memref<1x4x256xf32, #tpu.memory_space<vmem>>, %arg6: memref<2x512xf32, #tpu.memory_space<vmem>>, %arg7: memref<2x512xf32, #tpu.memory_space<vmem>>) attributes {dimension_semantics = [#tpu.dimension_semantics<parallel>], iteration_bounds = array<i64: 2>, scalar_prefetch = 0 : i64, scratch_operands = 2 : i64, tpu.core_type = #tpu.core_type<tc>, window_params = [{pipeline_mode = #tpu.pipeline_mode<synchronous>, transform_indices = @transform_0, window_bounds = array<i64: 2, 128>}, {transform_indices = @transform_1, window_bounds = array<i64: 2>}, {pipeline_mode = #tpu.pipeline_mode<synchronous>, transform_indices = @transform_2, window_bounds = array<i64: 2, 256>}, {transform_indices = @transform_3, window_bounds = array<i64: 1, 4, 256>}, {transform_indices = @transform_4, window_bounds = array<i64: 1, 4, 256>}]} {
    %c0 = arith.constant 0 : index
    %c0_0 = arith.constant 0 : index
    %c0_1 = arith.constant 0 : index
    %0 = vector.load %arg4[%c0, %c0_0, %c0_1] : memref<1x4x256xf32, #tpu.memory_space<vmem>>, vector<1x4x256xf32>
    %1 = vector.shape_cast %0 : vector<1x4x256xf32> to vector<4x256xf32>
    %cst = arith.constant dense<0.000000e+00> : vector<256xf32>
    %2 = vector.multi_reduction <add>, %1, %cst [0] : vector<4x256xf32> to vector<256xf32>
    %3 = vector.shape_cast %2 : vector<256xf32> to vector<1x256xf32>
    %cst_2 = arith.constant dense<0xFF800000> : vector<256xf32>
    %4 = vector.multi_reduction <maximumf>, %1, %cst_2 [0] : vector<4x256xf32> to vector<256xf32>
    %5 = vector.shape_cast %4 : vector<256xf32> to vector<1x256xf32>
    %cst_3 = arith.constant 2.500000e-01 : f32
    %6 = vector.broadcast %cst_3 : f32 to vector<1x256xf32>
    %7 = arith.mulf %3, %6 : vector<1x256xf32>
    %cst_4 = arith.constant 0.000000e+00 : f32
    %8 = vector.broadcast %cst_4 : f32 to vector<2x128xf32>
    %c0_5 = arith.constant 0 : index
    %c0_6 = arith.constant 0 : index
    %9 = vector.load %arg6[%c0_5, %c0_6] : memref<2x512xf32, #tpu.memory_space<vmem>>, vector<2x128xf32>
    tpu.vector_store %arg6[%c0_5, %c0_6], %8 {strides = array<i32>} : memref<2x512xf32, #tpu.memory_space<vmem>>, vector<2x128xf32>,
    %c0_7 = arith.constant 0 : index
    %c384 = arith.constant 384 : index
    %10 = vector.load %arg6[%c0_7, %c384] : memref<2x512xf32, #tpu.memory_space<vmem>>, vector<2x128xf32>
    tpu.vector_store %arg6[%c0_7, %c384], %8 {strides = array<i32>} : memref<2x512xf32, #tpu.memory_space<vmem>>, vector<2x128xf32>,
    %c0_8 = arith.constant 0 : index
    %c0_9 = arith.constant 0 : index
    %11 = vector.load %arg7[%c0_8, %c0_9] : memref<2x512xf32, #tpu.memory_space<vmem>>, vector<2x128xf32>
    tpu.vector_store %arg7[%c0_8, %c0_9], %8 {strides = array<i32>} : memref<2x512xf32, #tpu.memory_space<vmem>>, vector<2x128xf32>,
    %c0_10 = arith.constant 0 : index
    %c384_11 = arith.constant 384 : index
    %12 = vector.load %arg7[%c0_10, %c384_11] : memref<2x512xf32, #tpu.memory_space<vmem>>, vector<2x128xf32>
    tpu.vector_store %arg7[%c0_10, %c384_11], %8 {strides = array<i32>} : memref<2x512xf32, #tpu.memory_space<vmem>>, vector<2x128xf32>,
    %13 = tpu.concatenate %7, %5 in 0 : vector<1x256xf32>, vector<1x256xf32> -> vector<2x256xf32>
    %c0_12 = arith.constant 0 : index
    %c128 = arith.constant 128 : index
    %14 = vector.load %arg6[%c0_12, %c128] : memref<2x512xf32, #tpu.memory_space<vmem>>, vector<2x256xf32>
    tpu.vector_store %arg6[%c0_12, %c128], %13 {strides = array<i32>} : memref<2x512xf32, #tpu.memory_space<vmem>>, vector<2x256xf32>,
    %c0_13 = arith.constant 0 : index
    %c0_14 = arith.constant 0 : index
    %15 = vector.load %arg1[%c0_13, %c0_14] : memref<2x128xf32, #tpu.memory_space<vmem>>, vector<2x128xf32>
    %c0_15 = arith.constant 0 : index
    %c0_16 = arith.constant 0 : index
    %16 = vector.load %arg3[%c0_15, %c0_16] : memref<2x256xi32, #tpu.memory_space<vmem>>, vector<2x256xi32>
    %cst_17 = arith.constant 0.000000e+00 : f32
    %17 = vector.broadcast %cst_17 : f32 to vector<2x256xf32>
    %c-3_i32 = arith.constant -3 : i32
    %18 = vector.broadcast %c-3_i32 : i32 to vector<2x256xi32>
    %19 = arith.addi %16, %18 : vector<2x256xi32>
    %c0_i32 = arith.constant 0 : i32
    %20 = vector.broadcast %c0_i32 : i32 to vector<2x256xi32>
    %21 = arith.cmpi sge, %19, %20 : vector<2x256xi32>
    %c-3_i32_18 = arith.constant -3 : i32
    %22 = vector.broadcast %c-3_i32_18 : i32 to vector<2x256xi32>
    %23 = arith.addi %16, %22 : vector<2x256xi32>
    %c16_i32 = arith.constant 16 : i32
    %24 = vector.broadcast %c16_i32 : i32 to vector<2x256xi32>
    %25 = arith.cmpi slt, %23, %24 : vector<2x256xi32>
    %26 = arith.andi %21, %25 : vector<2x256xi1>
    %c0_19 = arith.constant 0 : index
    %c125 = arith.constant 125 : index
    %27 = vector.load %arg6[%c0_19, %c125] : memref<2x512xf32, #tpu.memory_space<vmem>>, vector<2x256xf32>
    %cst_20 = arith.constant 0.000000e+00 : f32
    %28 = vector.broadcast %cst_20 : f32 to vector<2x256xf32>
    %29 = arith.select %26, %27, %28 : vector<2x256xi1>, vector<2x256xf32>
    %c0_21 = arith.constant 0 : index
    %c128_22 = arith.constant 128 : index
    %30 = vector.load %arg7[%c0_21, %c128_22] : memref<2x512xf32, #tpu.memory_space<vmem>>, vector<2x256xf32>
    tpu.vector_store %arg7[%c0_21, %c128_22], %29 {strides = array<i32>} : memref<2x512xf32, #tpu.memory_space<vmem>>, vector<2x256xf32>,
    %31 = vector.extract_strided_slice %15 {offsets = [0, 0], sizes = [2, 1], strides = [1, 1]} : vector<2x128xf32> to vector<2x1xf32>
    %c0_23 = arith.constant 0 : index
    %c80 = arith.constant 80 : index
    %32 = vector.load %arg7[%c0_23, %c80] : memref<2x512xf32, #tpu.memory_space<vmem>>, vector<2x256xf32>
    %33 = vector.broadcast %31 : vector<2x1xf32> to vector<2x256xf32>
    %34 = arith.mulf %33, %32 : vector<2x256xf32>
    %35 = arith.addf %17, %34 : vector<2x256xf32>
    %36 = vector.extract_strided_slice %15 {offsets = [0, 7], sizes = [2, 1], strides = [1, 1]} : vector<2x128xf32> to vector<2x1xf32>
    %c0_24 = arith.constant 0 : index
    %c96 = arith.constant 96 : index
    %37 = vector.load %arg7[%c0_24, %c96] : memref<2x512xf32, #tpu.memory_space<vmem>>, vector<2x256xf32>
    %38 = vector.broadcast %36 : vector<2x1xf32> to vector<2x256xf32>
    %39 = arith.mulf %38, %37 : vector<2x256xf32>
    %40 = arith.addf %35, %39 : vector<2x256xf32>
    %41 = vector.extract_strided_slice %15 {offsets = [0, 14], sizes = [2, 1], strides = [1, 1]} : vector<2x128xf32> to vector<2x1xf32>
    %c0_25 = arith.constant 0 : index
    %c112 = arith.constant 112 : index
    %42 = vector.load %arg7[%c0_25, %c112] : memref<2x512xf32, #tpu.memory_space<vmem>>, vector<2x256xf32>
    %43 = vector.broadcast %41 : vector<2x1xf32> to vector<2x256xf32>
    %44 = arith.mulf %43, %42 : vector<2x256xf32>
    %45 = arith.addf %40, %44 : vector<2x256xf32>
    %46 = vector.extract_strided_slice %15 {offsets = [0, 21], sizes = [2, 1], strides = [1, 1]} : vector<2x128xf32> to vector<2x1xf32>
    %c0_26 = arith.constant 0 : index
    %c128_27 = arith.constant 128 : index
    %47 = vector.load %arg7[%c0_26, %c128_27] : memref<2x512xf32, #tpu.memory_space<vmem>>, vector<2x256xf32>
    %48 = vector.broadcast %46 : vector<2x1xf32> to vector<2x256xf32>
    %49 = arith.mulf %48, %47 : vector<2x256xf32>
    %50 = arith.addf %45, %49 : vector<2x256xf32>
    %51 = vector.extract_strided_slice %15 {offsets = [0, 28], sizes = [2, 1], strides = [1, 1]} : vector<2x128xf32> to vector<2x1xf32>
    %c0_28 = arith.constant 0 : index
    %c144 = arith.constant 144 : index
    %52 = vector.load %arg7[%c0_28, %c144] : memref<2x512xf32, #tpu.memory_space<vmem>>, vector<2x256xf32>
    %53 = vector.broadcast %51 : vector<2x1xf32> to vector<2x256xf32>
    %54 = arith.mulf %53, %52 : vector<2x256xf32>
    %55 = arith.addf %50, %54 : vector<2x256xf32>
    %56 = vector.extract_strided_slice %15 {offsets = [0, 35], sizes = [2, 1], strides = [1, 1]} : vector<2x128xf32> to vector<2x1xf32>
    %c0_29 = arith.constant 0 : index
    %c160 = arith.constant 160 : index
    %57 = vector.load %arg7[%c0_29, %c160] : memref<2x512xf32, #tpu.memory_space<vmem>>, vector<2x256xf32>
    %58 = vector.broadcast %56 : vector<2x1xf32> to vector<2x256xf32>
    %59 = arith.mulf %58, %57 : vector<2x256xf32>
    %60 = arith.addf %55, %59 : vector<2x256xf32>
    %61 = vector.extract_strided_slice %15 {offsets = [0, 42], sizes = [2, 1], strides = [1, 1]} : vector<2x128xf32> to vector<2x1xf32>
    %c0_30 = arith.constant 0 : index
    %c176 = arith.constant 176 : index
    %62 = vector.load %arg7[%c0_30, %c176] : memref<2x512xf32, #tpu.memory_space<vmem>>, vector<2x256xf32>
    %63 = vector.broadcast %61 : vector<2x1xf32> to vector<2x256xf32>
    %64 = arith.mulf %63, %62 : vector<2x256xf32>
    %65 = arith.addf %60, %64 : vector<2x256xf32>
    %c-2_i32 = arith.constant -2 : i32
    %66 = vector.broadcast %c-2_i32 : i32 to vector<2x256xi32>
    %67 = arith.addi %16, %66 : vector<2x256xi32>
    %c0_i32_31 = arith.constant 0 : i32
    %68 = vector.broadcast %c0_i32_31 : i32 to vector<2x256xi32>
    %69 = arith.cmpi sge, %67, %68 : vector<2x256xi32>
    %c-2_i32_32 = arith.constant -2 : i32
    %70 = vector.broadcast %c-2_i32_32 : i32 to vector<2x256xi32>
    %71 = arith.addi %16, %70 : vector<2x256xi32>
    %c16_i32_33 = arith.constant 16 : i32
    %72 = vector.broadcast %c16_i32_33 : i32 to vector<2x256xi32>
    %73 = arith.cmpi slt, %71, %72 : vector<2x256xi32>
    %74 = arith.andi %69, %73 : vector<2x256xi1>
    %c0_34 = arith.constant 0 : index
    %c126 = arith.constant 126 : index
    %75 = vector.load %arg6[%c0_34, %c126] : memref<2x512xf32, #tpu.memory_space<vmem>>, vector<2x256xf32>
    %cst_35 = arith.constant 0.000000e+00 : f32
    %76 = vector.broadcast %cst_35 : f32 to vector<2x256xf32>
    %77 = arith.select %74, %75, %76 : vector<2x256xi1>, vector<2x256xf32>
    %c0_36 = arith.constant 0 : index
    %c128_37 = arith.constant 128 : index
    %78 = vector.load %arg7[%c0_36, %c128_37] : memref<2x512xf32, #tpu.memory_space<vmem>>, vector<2x256xf32>
    tpu.vector_store %arg7[%c0_36, %c128_37], %77 {strides = array<i32>} : memref<2x512xf32, #tpu.memory_space<vmem>>, vector<2x256xf32>,
    %79 = vector.extract_strided_slice %15 {offsets = [0, 1], sizes = [2, 1], strides = [1, 1]} : vector<2x128xf32> to vector<2x1xf32>
    %c0_38 = arith.constant 0 : index
    %c80_39 = arith.constant 80 : index
    %80 = vector.load %arg7[%c0_38, %c80_39] : memref<2x512xf32, #tpu.memory_space<vmem>>, vector<2x256xf32>
    %81 = vector.broadcast %79 : vector<2x1xf32> to vector<2x256xf32>
    %82 = arith.mulf %81, %80 : vector<2x256xf32>
    %83 = arith.addf %65, %82 : vector<2x256xf32>
    %84 = vector.extract_strided_slice %15 {offsets = [0, 8], sizes = [2, 1], strides = [1, 1]} : vector<2x128xf32> to vector<2x1xf32>
    %c0_40 = arith.constant 0 : index
    %c96_41 = arith.constant 96 : index
    %85 = vector.load %arg7[%c0_40, %c96_41] : memref<2x512xf32, #tpu.memory_space<vmem>>, vector<2x256xf32>
    %86 = vector.broadcast %84 : vector<2x1xf32> to vector<2x256xf32>
    %87 = arith.mulf %86, %85 : vector<2x256xf32>
    %88 = arith.addf %83, %87 : vector<2x256xf32>
    %89 = vector.extract_strided_slice %15 {offsets = [0, 15], sizes = [2, 1], strides = [1, 1]} : vector<2x128xf32> to vector<2x1xf32>
    %c0_42 = arith.constant 0 : index
    %c112_43 = arith.constant 112 : index
    %90 = vector.load %arg7[%c0_42, %c112_43] : memref<2x512xf32, #tpu.memory_space<vmem>>, vector<2x256xf32>
    %91 = vector.broadcast %89 : vector<2x1xf32> to vector<2x256xf32>
    %92 = arith.mulf %91, %90 : vector<2x256xf32>
    %93 = arith.addf %88, %92 : vector<2x256xf32>
    %94 = vector.extract_strided_slice %15 {offsets = [0, 22], sizes = [2, 1], strides = [1, 1]} : vector<2x128xf32> to vector<2x1xf32>
    %c0_44 = arith.constant 0 : index
    %c128_45 = arith.constant 128 : index
    %95 = vector.load %arg7[%c0_44, %c128_45] : memref<2x512xf32, #tpu.memory_space<vmem>>, vector<2x256xf32>
    %96 = vector.broadcast %94 : vector<2x1xf32> to vector<2x256xf32>
    %97 = arith.mulf %96, %95 : vector<2x256xf32>
    %98 = arith.addf %93, %97 : vector<2x256xf32>
    %99 = vector.extract_strided_slice %15 {offsets = [0, 29], sizes = [2, 1], strides = [1, 1]} : vector<2x128xf32> to vector<2x1xf32>
    %c0_46 = arith.constant 0 : index
    %c144_47 = arith.constant 144 : index
    %100 = vector.load %arg7[%c0_46, %c144_47] : memref<2x512xf32, #tpu.memory_space<vmem>>, vector<2x256xf32>
    %101 = vector.broadcast %99 : vector<2x1xf32> to vector<2x256xf32>
    %102 = arith.mulf %101, %100 : vector<2x256xf32>
    %103 = arith.addf %98, %102 : vector<2x256xf32>
    %104 = vector.extract_strided_slice %15 {offsets = [0, 36], sizes = [2, 1], strides = [1, 1]} : vector<2x128xf32> to vector<2x1xf32>
    %c0_48 = arith.constant 0 : index
    %c160_49 = arith.constant 160 : index
    %105 = vector.load %arg7[%c0_48, %c160_49] : memref<2x512xf32, #tpu.memory_space<vmem>>, vector<2x256xf32>
    %106 = vector.broadcast %104 : vector<2x1xf32> to vector<2x256xf32>
    %107 = arith.mulf %106, %105 : vector<2x256xf32>
    %108 = arith.addf %103, %107 : vector<2x256xf32>
    %109 = vector.extract_strided_slice %15 {offsets = [0, 43], sizes = [2, 1], strides = [1, 1]} : vector<2x128xf32> to vector<2x1xf32>
    %c0_50 = arith.constant 0 : index
    %c176_51 = arith.constant 176 : index
    %110 = vector.load %arg7[%c0_50, %c176_51] : memref<2x512xf32, #tpu.memory_space<vmem>>, vector<2x256xf32>
    %111 = vector.broadcast %109 : vector<2x1xf32> to vector<2x256xf32>
    %112 = arith.mulf %111, %110 : vector<2x256xf32>
    %113 = arith.addf %108, %112 : vector<2x256xf32>
    %c-1_i32 = arith.constant -1 : i32
    %114 = vector.broadcast %c-1_i32 : i32 to vector<2x256xi32>
    %115 = arith.addi %16, %114 : vector<2x256xi32>
    %c0_i32_52 = arith.constant 0 : i32
    %116 = vector.broadcast %c0_i32_52 : i32 to vector<2x256xi32>
    %117 = arith.cmpi sge, %115, %116 : vector<2x256xi32>
    %c-1_i32_53 = arith.constant -1 : i32
    %118 = vector.broadcast %c-1_i32_53 : i32 to vector<2x256xi32>
    %119 = arith.addi %16, %118 : vector<2x256xi32>
    %c16_i32_54 = arith.constant 16 : i32
    %120 = vector.broadcast %c16_i32_54 : i32 to vector<2x256xi32>
    %121 = arith.cmpi slt, %119, %120 : vector<2x256xi32>
    %122 = arith.andi %117, %121 : vector<2x256xi1>
    %c0_55 = arith.constant 0 : index
    %c127 = arith.constant 127 : index
    %123 = vector.load %arg6[%c0_55, %c127] : memref<2x512xf32, #tpu.memory_space<vmem>>, vector<2x256xf32>
    %cst_56 = arith.constant 0.000000e+00 : f32
    %124 = vector.broadcast %cst_56 : f32 to vector<2x256xf32>
    %125 = arith.select %122, %123, %124 : vector<2x256xi1>, vector<2x256xf32>
    %c0_57 = arith.constant 0 : index
    %c128_58 = arith.constant 128 : index
    %126 = vector.load %arg7[%c0_57, %c128_58] : memref<2x512xf32, #tpu.memory_space<vmem>>, vector<2x256xf32>
    tpu.vector_store %arg7[%c0_57, %c128_58], %125 {strides = array<i32>} : memref<2x512xf32, #tpu.memory_space<vmem>>, vector<2x256xf32>,
    %127 = vector.extract_strided_slice %15 {offsets = [0, 2], sizes = [2, 1], strides = [1, 1]} : vector<2x128xf32> to vector<2x1xf32>
    %c0_59 = arith.constant 0 : index
    %c80_60 = arith.constant 80 : index
    %128 = vector.load %arg7[%c0_59, %c80_60] : memref<2x512xf32, #tpu.memory_space<vmem>>, vector<2x256xf32>
    %129 = vector.broadcast %127 : vector<2x1xf32> to vector<2x256xf32>
    %130 = arith.mulf %129, %128 : vector<2x256xf32>
    %131 = arith.addf %113, %130 : vector<2x256xf32>
    %132 = vector.extract_strided_slice %15 {offsets = [0, 9], sizes = [2, 1], strides = [1, 1]} : vector<2x128xf32> to vector<2x1xf32>
    %c0_61 = arith.constant 0 : index
    %c96_62 = arith.constant 96 : index
    %133 = vector.load %arg7[%c0_61, %c96_62] : memref<2x512xf32, #tpu.memory_space<vmem>>, vector<2x256xf32>
    %134 = vector.broadcast %132 : vector<2x1xf32> to vector<2x256xf32>
    %135 = arith.mulf %134, %133 : vector<2x256xf32>
    %136 = arith.addf %131, %135 : vector<2x256xf32>
    %137 = vector.extract_strided_slice %15 {offsets = [0, 16], sizes = [2, 1], strides = [1, 1]} : vector<2x128xf32> to vector<2x1xf32>
    %c0_63 = arith.constant 0 : index
    %c112_64 = arith.constant 112 : index
    %138 = vector.load %arg7[%c0_63, %c112_64] : memref<2x512xf32, #tpu.memory_space<vmem>>, vector<2x256xf32>
    %139 = vector.broadcast %137 : vector<2x1xf32> to vector<2x256xf32>
    %140 = arith.mulf %139, %138 : vector<2x256xf32>
    %141 = arith.addf %136, %140 : vector<2x256xf32>
    %142 = vector.extract_strided_slice %15 {offsets = [0, 23], sizes = [2, 1], strides = [1, 1]} : vector<2x128xf32> to vector<2x1xf32>
    %c0_65 = arith.constant 0 : index
    %c128_66 = arith.constant 128 : index
    %143 = vector.load %arg7[%c0_65, %c128_66] : memref<2x512xf32, #tpu.memory_space<vmem>>, vector<2x256xf32>
    %144 = vector.broadcast %142 : vector<2x1xf32> to vector<2x256xf32>
    %145 = arith.mulf %144, %143 : vector<2x256xf32>
    %146 = arith.addf %141, %145 : vector<2x256xf32>
    %147 = vector.extract_strided_slice %15 {offsets = [0, 30], sizes = [2, 1], strides = [1, 1]} : vector<2x128xf32> to vector<2x1xf32>
    %c0_67 = arith.constant 0 : index
    %c144_68 = arith.constant 144 : index
    %148 = vector.load %arg7[%c0_67, %c144_68] : memref<2x512xf32, #tpu.memory_space<vmem>>, vector<2x256xf32>
    %149 = vector.broadcast %147 : vector<2x1xf32> to vector<2x256xf32>
    %150 = arith.mulf %149, %148 : vector<2x256xf32>
    %151 = arith.addf %146, %150 : vector<2x256xf32>
    %152 = vector.extract_strided_slice %15 {offsets = [0, 37], sizes = [2, 1], strides = [1, 1]} : vector<2x128xf32> to vector<2x1xf32>
    %c0_69 = arith.constant 0 : index
    %c160_70 = arith.constant 160 : index
    %153 = vector.load %arg7[%c0_69, %c160_70] : memref<2x512xf32, #tpu.memory_space<vmem>>, vector<2x256xf32>
    %154 = vector.broadcast %152 : vector<2x1xf32> to vector<2x256xf32>
    %155 = arith.mulf %154, %153 : vector<2x256xf32>
    %156 = arith.addf %151, %155 : vector<2x256xf32>
    %157 = vector.extract_strided_slice %15 {offsets = [0, 44], sizes = [2, 1], strides = [1, 1]} : vector<2x128xf32> to vector<2x1xf32>
    %c0_71 = arith.constant 0 : index
    %c176_72 = arith.constant 176 : index
    %158 = vector.load %arg7[%c0_71, %c176_72] : memref<2x512xf32, #tpu.memory_space<vmem>>, vector<2x256xf32>
    %159 = vector.broadcast %157 : vector<2x1xf32> to vector<2x256xf32>
    %160 = arith.mulf %159, %158 : vector<2x256xf32>
    %161 = arith.addf %156, %160 : vector<2x256xf32>
    %c0_i32_73 = arith.constant 0 : i32
    %162 = vector.broadcast %c0_i32_73 : i32 to vector<2x256xi32>
    %163 = arith.addi %16, %162 : vector<2x256xi32>
    %c0_i32_74 = arith.constant 0 : i32
    %164 = vector.broadcast %c0_i32_74 : i32 to vector<2x256xi32>
    %165 = arith.cmpi sge, %163, %164 : vector<2x256xi32>
    %c0_i32_75 = arith.constant 0 : i32
    %166 = vector.broadcast %c0_i32_75 : i32 to vector<2x256xi32>
    %167 = arith.addi %16, %166 : vector<2x256xi32>
    %c16_i32_76 = arith.constant 16 : i32
    %168 = vector.broadcast %c16_i32_76 : i32 to vector<2x256xi32>
    %169 = arith.cmpi slt, %167, %168 : vector<2x256xi32>
    %170 = arith.andi %165, %169 : vector<2x256xi1>
    %c0_77 = arith.constant 0 : index
    %c128_78 = arith.constant 128 : index
    %171 = vector.load %arg6[%c0_77, %c128_78] : memref<2x512xf32, #tpu.memory_space<vmem>>, vector<2x256xf32>
    %cst_79 = arith.constant 0.000000e+00 : f32
    %172 = vector.broadcast %cst_79 : f32 to vector<2x256xf32>
    %173 = arith.select %170, %171, %172 : vector<2x256xi1>, vector<2x256xf32>
    %c0_80 = arith.constant 0 : index
    %c128_81 = arith.constant 128 : index
    %174 = vector.load %arg7[%c0_80, %c128_81] : memref<2x512xf32, #tpu.memory_space<vmem>>, vector<2x256xf32>
    tpu.vector_store %arg7[%c0_80, %c128_81], %173 {strides = array<i32>} : memref<2x512xf32, #tpu.memory_space<vmem>>, vector<2x256xf32>,
    %175 = vector.extract_strided_slice %15 {offsets = [0, 3], sizes = [2, 1], strides = [1, 1]} : vector<2x128xf32> to vector<2x1xf32>
    %c0_82 = arith.constant 0 : index
    %c80_83 = arith.constant 80 : index
    %176 = vector.load %arg7[%c0_82, %c80_83] : memref<2x512xf32, #tpu.memory_space<vmem>>, vector<2x256xf32>
    %177 = vector.broadcast %175 : vector<2x1xf32> to vector<2x256xf32>
    %178 = arith.mulf %177, %176 : vector<2x256xf32>
    %179 = arith.addf %161, %178 : vector<2x256xf32>
    %180 = vector.extract_strided_slice %15 {offsets = [0, 10], sizes = [2, 1], strides = [1, 1]} : vector<2x128xf32> to vector<2x1xf32>
    %c0_84 = arith.constant 0 : index
    %c96_85 = arith.constant 96 : index
    %181 = vector.load %arg7[%c0_84, %c96_85] : memref<2x512xf32, #tpu.memory_space<vmem>>, vector<2x256xf32>
    %182 = vector.broadcast %180 : vector<2x1xf32> to vector<2x256xf32>
    %183 = arith.mulf %182, %181 : vector<2x256xf32>
    %184 = arith.addf %179, %183 : vector<2x256xf32>
    %185 = vector.extract_strided_slice %15 {offsets = [0, 17], sizes = [2, 1], strides = [1, 1]} : vector<2x128xf32> to vector<2x1xf32>
    %c0_86 = arith.constant 0 : index
    %c112_87 = arith.constant 112 : index
    %186 = vector.load %arg7[%c0_86, %c112_87] : memref<2x512xf32, #tpu.memory_space<vmem>>, vector<2x256xf32>
    %187 = vector.broadcast %185 : vector<2x1xf32> to vector<2x256xf32>
    %188 = arith.mulf %187, %186 : vector<2x256xf32>
    %189 = arith.addf %184, %188 : vector<2x256xf32>
    %190 = vector.extract_strided_slice %15 {offsets = [0, 24], sizes = [2, 1], strides = [1, 1]} : vector<2x128xf32> to vector<2x1xf32>
    %c0_88 = arith.constant 0 : index
    %c128_89 = arith.constant 128 : index
    %191 = vector.load %arg7[%c0_88, %c128_89] : memref<2x512xf32, #tpu.memory_space<vmem>>, vector<2x256xf32>
    %192 = vector.broadcast %190 : vector<2x1xf32> to vector<2x256xf32>
    %193 = arith.mulf %192, %191 : vector<2x256xf32>
    %194 = arith.addf %189, %193 : vector<2x256xf32>
    %195 = vector.extract_strided_slice %15 {offsets = [0, 31], sizes = [2, 1], strides = [1, 1]} : vector<2x128xf32> to vector<2x1xf32>
    %c0_90 = arith.constant 0 : index
    %c144_91 = arith.constant 144 : index
    %196 = vector.load %arg7[%c0_90, %c144_91] : memref<2x512xf32, #tpu.memory_space<vmem>>, vector<2x256xf32>
    %197 = vector.broadcast %195 : vector<2x1xf32> to vector<2x256xf32>
    %198 = arith.mulf %197, %196 : vector<2x256xf32>
    %199 = arith.addf %194, %198 : vector<2x256xf32>
    %200 = vector.extract_strided_slice %15 {offsets = [0, 38], sizes = [2, 1], strides = [1, 1]} : vector<2x128xf32> to vector<2x1xf32>
    %c0_92 = arith.constant 0 : index
    %c160_93 = arith.constant 160 : index
    %201 = vector.load %arg7[%c0_92, %c160_93] : memref<2x512xf32, #tpu.memory_space<vmem>>, vector<2x256xf32>
    %202 = vector.broadcast %200 : vector<2x1xf32> to vector<2x256xf32>
    %203 = arith.mulf %202, %201 : vector<2x256xf32>
    %204 = arith.addf %199, %203 : vector<2x256xf32>
    %205 = vector.extract_strided_slice %15 {offsets = [0, 45], sizes = [2, 1], strides = [1, 1]} : vector<2x128xf32> to vector<2x1xf32>
    %c0_94 = arith.constant 0 : index
    %c176_95 = arith.constant 176 : index
    %206 = vector.load %arg7[%c0_94, %c176_95] : memref<2x512xf32, #tpu.memory_space<vmem>>, vector<2x256xf32>
    %207 = vector.broadcast %205 : vector<2x1xf32> to vector<2x256xf32>
    %208 = arith.mulf %207, %206 : vector<2x256xf32>
    %209 = arith.addf %204, %208 : vector<2x256xf32>
    %c1_i32 = arith.constant 1 : i32
    %210 = vector.broadcast %c1_i32 : i32 to vector<2x256xi32>
    %211 = arith.addi %16, %210 : vector<2x256xi32>
    %c0_i32_96 = arith.constant 0 : i32
    %212 = vector.broadcast %c0_i32_96 : i32 to vector<2x256xi32>
    %213 = arith.cmpi sge, %211, %212 : vector<2x256xi32>
    %c1_i32_97 = arith.constant 1 : i32
    %214 = vector.broadcast %c1_i32_97 : i32 to vector<2x256xi32>
    %215 = arith.addi %16, %214 : vector<2x256xi32>
    %c16_i32_98 = arith.constant 16 : i32
    %216 = vector.broadcast %c16_i32_98 : i32 to vector<2x256xi32>
    %217 = arith.cmpi slt, %215, %216 : vector<2x256xi32>
    %218 = arith.andi %213, %217 : vector<2x256xi1>
    %c0_99 = arith.constant 0 : index
    %c129 = arith.constant 129 : index
    %219 = vector.load %arg6[%c0_99, %c129] : memref<2x512xf32, #tpu.memory_space<vmem>>, vector<2x256xf32>
    %cst_100 = arith.constant 0.000000e+00 : f32
    %220 = vector.broadcast %cst_100 : f32 to vector<2x256xf32>
    %221 = arith.select %218, %219, %220 : vector<2x256xi1>, vector<2x256xf32>
    %c0_101 = arith.constant 0 : index
    %c128_102 = arith.constant 128 : index
    %222 = vector.load %arg7[%c0_101, %c128_102] : memref<2x512xf32, #tpu.memory_space<vmem>>, vector<2x256xf32>
    tpu.vector_store %arg7[%c0_101, %c128_102], %221 {strides = array<i32>} : memref<2x512xf32, #tpu.memory_space<vmem>>, vector<2x256xf32>,
    %223 = vector.extract_strided_slice %15 {offsets = [0, 4], sizes = [2, 1], strides = [1, 1]} : vector<2x128xf32> to vector<2x1xf32>
    %c0_103 = arith.constant 0 : index
    %c80_104 = arith.constant 80 : index
    %224 = vector.load %arg7[%c0_103, %c80_104] : memref<2x512xf32, #tpu.memory_space<vmem>>, vector<2x256xf32>
    %225 = vector.broadcast %223 : vector<2x1xf32> to vector<2x256xf32>
    %226 = arith.mulf %225, %224 : vector<2x256xf32>
    %227 = arith.addf %209, %226 : vector<2x256xf32>
    %228 = vector.extract_strided_slice %15 {offsets = [0, 11], sizes = [2, 1], strides = [1, 1]} : vector<2x128xf32> to vector<2x1xf32>
    %c0_105 = arith.constant 0 : index
    %c96_106 = arith.constant 96 : index
    %229 = vector.load %arg7[%c0_105, %c96_106] : memref<2x512xf32, #tpu.memory_space<vmem>>, vector<2x256xf32>
    %230 = vector.broadcast %228 : vector<2x1xf32> to vector<2x256xf32>
    %231 = arith.mulf %230, %229 : vector<2x256xf32>
    %232 = arith.addf %227, %231 : vector<2x256xf32>
    %233 = vector.extract_strided_slice %15 {offsets = [0, 18], sizes = [2, 1], strides = [1, 1]} : vector<2x128xf32> to vector<2x1xf32>
    %c0_107 = arith.constant 0 : index
    %c112_108 = arith.constant 112 : index
    %234 = vector.load %arg7[%c0_107, %c112_108] : memref<2x512xf32, #tpu.memory_space<vmem>>, vector<2x256xf32>
    %235 = vector.broadcast %233 : vector<2x1xf32> to vector<2x256xf32>
    %236 = arith.mulf %235, %234 : vector<2x256xf32>
    %237 = arith.addf %232, %236 : vector<2x256xf32>
    %238 = vector.extract_strided_slice %15 {offsets = [0, 25], sizes = [2, 1], strides = [1, 1]} : vector<2x128xf32> to vector<2x1xf32>
    %c0_109 = arith.constant 0 : index
    %c128_110 = arith.constant 128 : index
    %239 = vector.load %arg7[%c0_109, %c128_110] : memref<2x512xf32, #tpu.memory_space<vmem>>, vector<2x256xf32>
    %240 = vector.broadcast %238 : vector<2x1xf32> to vector<2x256xf32>
    %241 = arith.mulf %240, %239 : vector<2x256xf32>
    %242 = arith.addf %237, %241 : vector<2x256xf32>
    %243 = vector.extract_strided_slice %15 {offsets = [0, 32], sizes = [2, 1], strides = [1, 1]} : vector<2x128xf32> to vector<2x1xf32>
    %c0_111 = arith.constant 0 : index
    %c144_112 = arith.constant 144 : index
    %244 = vector.load %arg7[%c0_111, %c144_112] : memref<2x512xf32, #tpu.memory_space<vmem>>, vector<2x256xf32>
    %245 = vector.broadcast %243 : vector<2x1xf32> to vector<2x256xf32>
    %246 = arith.mulf %245, %244 : vector<2x256xf32>
    %247 = arith.addf %242, %246 : vector<2x256xf32>
    %248 = vector.extract_strided_slice %15 {offsets = [0, 39], sizes = [2, 1], strides = [1, 1]} : vector<2x128xf32> to vector<2x1xf32>
    %c0_113 = arith.constant 0 : index
    %c160_114 = arith.constant 160 : index
    %249 = vector.load %arg7[%c0_113, %c160_114] : memref<2x512xf32, #tpu.memory_space<vmem>>, vector<2x256xf32>
    %250 = vector.broadcast %248 : vector<2x1xf32> to vector<2x256xf32>
    %251 = arith.mulf %250, %249 : vector<2x256xf32>
    %252 = arith.addf %247, %251 : vector<2x256xf32>
    %253 = vector.extract_strided_slice %15 {offsets = [0, 46], sizes = [2, 1], strides = [1, 1]} : vector<2x128xf32> to vector<2x1xf32>
    %c0_115 = arith.constant 0 : index
    %c176_116 = arith.constant 176 : index
    %254 = vector.load %arg7[%c0_115, %c176_116] : memref<2x512xf32, #tpu.memory_space<vmem>>, vector<2x256xf32>
    %255 = vector.broadcast %253 : vector<2x1xf32> to vector<2x256xf32>
    %256 = arith.mulf %255, %254 : vector<2x256xf32>
    %257 = arith.addf %252, %256 : vector<2x256xf32>
    %c2_i32 = arith.constant 2 : i32
    %258 = vector.broadcast %c2_i32 : i32 to vector<2x256xi32>
    %259 = arith.addi %16, %258 : vector<2x256xi32>
    %c0_i32_117 = arith.constant 0 : i32
    %260 = vector.broadcast %c0_i32_117 : i32 to vector<2x256xi32>
    %261 = arith.cmpi sge, %259, %260 : vector<2x256xi32>
    %c2_i32_118 = arith.constant 2 : i32
    %262 = vector.broadcast %c2_i32_118 : i32 to vector<2x256xi32>
    %263 = arith.addi %16, %262 : vector<2x256xi32>
    %c16_i32_119 = arith.constant 16 : i32
    %264 = vector.broadcast %c16_i32_119 : i32 to vector<2x256xi32>
    %265 = arith.cmpi slt, %263, %264 : vector<2x256xi32>
    %266 = arith.andi %261, %265 : vector<2x256xi1>
    %c0_120 = arith.constant 0 : index
    %c130 = arith.constant 130 : index
    %267 = vector.load %arg6[%c0_120, %c130] : memref<2x512xf32, #tpu.memory_space<vmem>>, vector<2x256xf32>
    %cst_121 = arith.constant 0.000000e+00 : f32
    %268 = vector.broadcast %cst_121 : f32 to vector<2x256xf32>
    %269 = arith.select %266, %267, %268 : vector<2x256xi1>, vector<2x256xf32>
    %c0_122 = arith.constant 0 : index
    %c128_123 = arith.constant 128 : index
    %270 = vector.load %arg7[%c0_122, %c128_123] : memref<2x512xf32, #tpu.memory_space<vmem>>, vector<2x256xf32>
    tpu.vector_store %arg7[%c0_122, %c128_123], %269 {strides = array<i32>} : memref<2x512xf32, #tpu.memory_space<vmem>>, vector<2x256xf32>,
    %271 = vector.extract_strided_slice %15 {offsets = [0, 5], sizes = [2, 1], strides = [1, 1]} : vector<2x128xf32> to vector<2x1xf32>
    %c0_124 = arith.constant 0 : index
    %c80_125 = arith.constant 80 : index
    %272 = vector.load %arg7[%c0_124, %c80_125] : memref<2x512xf32, #tpu.memory_space<vmem>>, vector<2x256xf32>
    %273 = vector.broadcast %271 : vector<2x1xf32> to vector<2x256xf32>
    %274 = arith.mulf %273, %272 : vector<2x256xf32>
    %275 = arith.addf %257, %274 : vector<2x256xf32>
    %276 = vector.extract_strided_slice %15 {offsets = [0, 12], sizes = [2, 1], strides = [1, 1]} : vector<2x128xf32> to vector<2x1xf32>
    %c0_126 = arith.constant 0 : index
    %c96_127 = arith.constant 96 : index
    %277 = vector.load %arg7[%c0_126, %c96_127] : memref<2x512xf32, #tpu.memory_space<vmem>>, vector<2x256xf32>
    %278 = vector.broadcast %276 : vector<2x1xf32> to vector<2x256xf32>
    %279 = arith.mulf %278, %277 : vector<2x256xf32>
    %280 = arith.addf %275, %279 : vector<2x256xf32>
    %281 = vector.extract_strided_slice %15 {offsets = [0, 19], sizes = [2, 1], strides = [1, 1]} : vector<2x128xf32> to vector<2x1xf32>
    %c0_128 = arith.constant 0 : index
    %c112_129 = arith.constant 112 : index
    %282 = vector.load %arg7[%c0_128, %c112_129] : memref<2x512xf32, #tpu.memory_space<vmem>>, vector<2x256xf32>
    %283 = vector.broadcast %281 : vector<2x1xf32> to vector<2x256xf32>
    %284 = arith.mulf %283, %282 : vector<2x256xf32>
    %285 = arith.addf %280, %284 : vector<2x256xf32>
    %286 = vector.extract_strided_slice %15 {offsets = [0, 26], sizes = [2, 1], strides = [1, 1]} : vector<2x128xf32> to vector<2x1xf32>
    %c0_130 = arith.constant 0 : index
    %c128_131 = arith.constant 128 : index
    %287 = vector.load %arg7[%c0_130, %c128_131] : memref<2x512xf32, #tpu.memory_space<vmem>>, vector<2x256xf32>
    %288 = vector.broadcast %286 : vector<2x1xf32> to vector<2x256xf32>
    %289 = arith.mulf %288, %287 : vector<2x256xf32>
    %290 = arith.addf %285, %289 : vector<2x256xf32>
    %291 = vector.extract_strided_slice %15 {offsets = [0, 33], sizes = [2, 1], strides = [1, 1]} : vector<2x128xf32> to vector<2x1xf32>
    %c0_132 = arith.constant 0 : index
    %c144_133 = arith.constant 144 : index
    %292 = vector.load %arg7[%c0_132, %c144_133] : memref<2x512xf32, #tpu.memory_space<vmem>>, vector<2x256xf32>
    %293 = vector.broadcast %291 : vector<2x1xf32> to vector<2x256xf32>
    %294 = arith.mulf %293, %292 : vector<2x256xf32>
    %295 = arith.addf %290, %294 : vector<2x256xf32>
    %296 = vector.extract_strided_slice %15 {offsets = [0, 40], sizes = [2, 1], strides = [1, 1]} : vector<2x128xf32> to vector<2x1xf32>
    %c0_134 = arith.constant 0 : index
    %c160_135 = arith.constant 160 : index
    %297 = vector.load %arg7[%c0_134, %c160_135] : memref<2x512xf32, #tpu.memory_space<vmem>>, vector<2x256xf32>
    %298 = vector.broadcast %296 : vector<2x1xf32> to vector<2x256xf32>
    %299 = arith.mulf %298, %297 : vector<2x256xf32>
    %300 = arith.addf %295, %299 : vector<2x256xf32>
    %301 = vector.extract_strided_slice %15 {offsets = [0, 47], sizes = [2, 1], strides = [1, 1]} : vector<2x128xf32> to vector<2x1xf32>
    %c0_136 = arith.constant 0 : index
    %c176_137 = arith.constant 176 : index
    %302 = vector.load %arg7[%c0_136, %c176_137] : memref<2x512xf32, #tpu.memory_space<vmem>>, vector<2x256xf32>
    %303 = vector.broadcast %301 : vector<2x1xf32> to vector<2x256xf32>
    %304 = arith.mulf %303, %302 : vector<2x256xf32>
    %305 = arith.addf %300, %304 : vector<2x256xf32>
    %c3_i32 = arith.constant 3 : i32
    %306 = vector.broadcast %c3_i32 : i32 to vector<2x256xi32>
    %307 = arith.addi %16, %306 : vector<2x256xi32>
    %c0_i32_138 = arith.constant 0 : i32
    %308 = vector.broadcast %c0_i32_138 : i32 to vector<2x256xi32>
    %309 = arith.cmpi sge, %307, %308 : vector<2x256xi32>
    %c3_i32_139 = arith.constant 3 : i32
    %310 = vector.broadcast %c3_i32_139 : i32 to vector<2x256xi32>
    %311 = arith.addi %16, %310 : vector<2x256xi32>
    %c16_i32_140 = arith.constant 16 : i32
    %312 = vector.broadcast %c16_i32_140 : i32 to vector<2x256xi32>
    %313 = arith.cmpi slt, %311, %312 : vector<2x256xi32>
    %314 = arith.andi %309, %313 : vector<2x256xi1>
    %c0_141 = arith.constant 0 : index
    %c131 = arith.constant 131 : index
    %315 = vector.load %arg6[%c0_141, %c131] : memref<2x512xf32, #tpu.memory_space<vmem>>, vector<2x256xf32>
    %cst_142 = arith.constant 0.000000e+00 : f32
    %316 = vector.broadcast %cst_142 : f32 to vector<2x256xf32>
    %317 = arith.select %314, %315, %316 : vector<2x256xi1>, vector<2x256xf32>
    %c0_143 = arith.constant 0 : index
    %c128_144 = arith.constant 128 : index
    %318 = vector.load %arg7[%c0_143, %c128_144] : memref<2x512xf32, #tpu.memory_space<vmem>>, vector<2x256xf32>
    tpu.vector_store %arg7[%c0_143, %c128_144], %317 {strides = array<i32>} : memref<2x512xf32, #tpu.memory_space<vmem>>, vector<2x256xf32>,
    %319 = vector.extract_strided_slice %15 {offsets = [0, 6], sizes = [2, 1], strides = [1, 1]} : vector<2x128xf32> to vector<2x1xf32>
    %c0_145 = arith.constant 0 : index
    %c80_146 = arith.constant 80 : index
    %320 = vector.load %arg7[%c0_145, %c80_146] : memref<2x512xf32, #tpu.memory_space<vmem>>, vector<2x256xf32>
    %321 = vector.broadcast %319 : vector<2x1xf32> to vector<2x256xf32>
    %322 = arith.mulf %321, %320 : vector<2x256xf32>
    %323 = arith.addf %305, %322 : vector<2x256xf32>
    %324 = vector.extract_strided_slice %15 {offsets = [0, 13], sizes = [2, 1], strides = [1, 1]} : vector<2x128xf32> to vector<2x1xf32>
    %c0_147 = arith.constant 0 : index
    %c96_148 = arith.constant 96 : index
    %325 = vector.load %arg7[%c0_147, %c96_148] : memref<2x512xf32, #tpu.memory_space<vmem>>, vector<2x256xf32>
    %326 = vector.broadcast %324 : vector<2x1xf32> to vector<2x256xf32>
    %327 = arith.mulf %326, %325 : vector<2x256xf32>
    %328 = arith.addf %323, %327 : vector<2x256xf32>
    %329 = vector.extract_strided_slice %15 {offsets = [0, 20], sizes = [2, 1], strides = [1, 1]} : vector<2x128xf32> to vector<2x1xf32>
    %c0_149 = arith.constant 0 : index
    %c112_150 = arith.constant 112 : index
    %330 = vector.load %arg7[%c0_149, %c112_150] : memref<2x512xf32, #tpu.memory_space<vmem>>, vector<2x256xf32>
    %331 = vector.broadcast %329 : vector<2x1xf32> to vector<2x256xf32>
    %332 = arith.mulf %331, %330 : vector<2x256xf32>
    %333 = arith.addf %328, %332 : vector<2x256xf32>
    %334 = vector.extract_strided_slice %15 {offsets = [0, 27], sizes = [2, 1], strides = [1, 1]} : vector<2x128xf32> to vector<2x1xf32>
    %c0_151 = arith.constant 0 : index
    %c128_152 = arith.constant 128 : index
    %335 = vector.load %arg7[%c0_151, %c128_152] : memref<2x512xf32, #tpu.memory_space<vmem>>, vector<2x256xf32>
    %336 = vector.broadcast %334 : vector<2x1xf32> to vector<2x256xf32>
    %337 = arith.mulf %336, %335 : vector<2x256xf32>
    %338 = arith.addf %333, %337 : vector<2x256xf32>
    %339 = vector.extract_strided_slice %15 {offsets = [0, 34], sizes = [2, 1], strides = [1, 1]} : vector<2x128xf32> to vector<2x1xf32>
    %c0_153 = arith.constant 0 : index
    %c144_154 = arith.constant 144 : index
    %340 = vector.load %arg7[%c0_153, %c144_154] : memref<2x512xf32, #tpu.memory_space<vmem>>, vector<2x256xf32>
    %341 = vector.broadcast %339 : vector<2x1xf32> to vector<2x256xf32>
    %342 = arith.mulf %341, %340 : vector<2x256xf32>
    %343 = arith.addf %338, %342 : vector<2x256xf32>
    %344 = vector.extract_strided_slice %15 {offsets = [0, 41], sizes = [2, 1], strides = [1, 1]} : vector<2x128xf32> to vector<2x1xf32>
    %c0_155 = arith.constant 0 : index
    %c160_156 = arith.constant 160 : index
    %345 = vector.load %arg7[%c0_155, %c160_156] : memref<2x512xf32, #tpu.memory_space<vmem>>, vector<2x256xf32>
    %346 = vector.broadcast %344 : vector<2x1xf32> to vector<2x256xf32>
    %347 = arith.mulf %346, %345 : vector<2x256xf32>
    %348 = arith.addf %343, %347 : vector<2x256xf32>
    %349 = vector.extract_strided_slice %15 {offsets = [0, 48], sizes = [2, 1], strides = [1, 1]} : vector<2x128xf32> to vector<2x1xf32>
    %c0_157 = arith.constant 0 : index
    %c176_158 = arith.constant 176 : index
    %350 = vector.load %arg7[%c0_157, %c176_158] : memref<2x512xf32, #tpu.memory_space<vmem>>, vector<2x256xf32>
    %351 = vector.broadcast %349 : vector<2x1xf32> to vector<2x256xf32>
    %352 = arith.mulf %351, %350 : vector<2x256xf32>
    %353 = arith.addf %348, %352 : vector<2x256xf32>
    %354 = vector.extract_strided_slice %353 {offsets = [0, 0], sizes = [1, 256], strides = [1, 1]} : vector<2x256xf32> to vector<1x256xf32>
    %355 = vector.extract_strided_slice %353 {offsets = [1, 0], sizes = [1, 256], strides = [1, 1]} : vector<2x256xf32> to vector<1x256xf32>
    %356 = arith.addf %354, %355 : vector<1x256xf32>
    %c0_159 = arith.constant 0 : index
    %357 = memref.load %arg2[%c0_159] : memref<2xf32, #tpu.memory_space<smem>>
    %358 = vector.broadcast %357 : f32 to vector<1x256xf32>
    %359 = arith.mulf %356, %358 : vector<1x256xf32>
    %c1 = arith.constant 1 : index
    %360 = memref.load %arg2[%c1] : memref<2xf32, #tpu.memory_space<smem>>
    %361 = vector.broadcast %360 : f32 to vector<1x256xf32>
    %362 = arith.addf %359, %361 : vector<1x256xf32>
    %363 = arith.negf %362 : vector<1x256xf32>
    %364 = math.exp %363 : vector<1x256xf32>
    %cst_160 = arith.constant 1.000000e+00 : f32
    %365 = vector.broadcast %cst_160 : f32 to vector<1x256xf32>
    %366 = arith.addf %365, %364 : vector<1x256xf32>
    %367 = arith.divf %365, %366 : vector<1x256xf32>
    %c0_161 = arith.constant 0 : index
    %c0_162 = arith.constant 0 : index
    %c0_163 = arith.constant 0 : index
    %368 = vector.load %arg4[%c0_161, %c0_162, %c0_163] : memref<1x4x256xf32, #tpu.memory_space<vmem>>, vector<1x4x256xf32>
    %369 = vector.shape_cast %368 : vector<1x4x256xf32> to vector<4x256xf32>
    %370 = vector.broadcast %367 : vector<1x256xf32> to vector<4x256xf32>
    %371 = arith.mulf %369, %370 : vector<4x256xf32>
    %c0_164 = arith.constant 0 : index
    %c0_165 = arith.constant 0 : index
    %c0_166 = arith.constant 0 : index
    %372 = vector.load %arg5[%c0_164, %c0_165, %c0_166] : memref<1x4x256xf32, #tpu.memory_space<vmem>>, vector<1x4x256xf32>
    %373 = vector.shape_cast %372 : vector<1x4x256xf32> to vector<4x256xf32>
    %374 = vector.shape_cast %371 : vector<4x256xf32> to vector<1x4x256xf32>
    tpu.vector_store %arg5[%c0_164, %c0_165, %c0_166], %374 {strides = array<i32>} : memref<1x4x256xf32, #tpu.memory_space<vmem>>, vector<1x4x256xf32>,
    return
  }
  func.func @transform_0(%arg0: i32) -> (i32, i32) {
    %c0_i32 = arith.constant 0 : i32
    %c0_i32_0 = arith.constant 0 : i32
    %c0_i32_1 = arith.constant 0 : i32
    return %c0_i32, %c0_i32_0 : i32, i32
  }
  func.func @transform_1(%arg0: i32) -> i32 {
    %c0_i32 = arith.constant 0 : i32
    %c0_i32_0 = arith.constant 0 : i32
    return %c0_i32 : i32
  }
  func.func @transform_2(%arg0: i32) -> (i32, i32) {
    %c0_i32 = arith.constant 0 : i32
    %c0_i32_0 = arith.constant 0 : i32
    %c0_i32_1 = arith.constant 0 : i32
    return %c0_i32, %c0_i32_0 : i32, i32
  }
  func.func @transform_3(%arg0: i32) -> (i32, i32, i32) {
    %c0_i32 = arith.constant 0 : i32
    %c0_i32_0 = arith.constant 0 : i32
    %c0_i32_1 = arith.constant 0 : i32
    return %arg0, %c0_i32, %c0_i32_0 : i32, i32, i32
  }
  func.func @transform_4(%arg0: i32) -> (i32, i32, i32) {
    %c0_i32 = arith.constant 0 : i32
    %c0_i32_0 = arith.constant 0 : i32
    %c0_i32_1 = arith.constant 0 : i32
    return %arg0, %c0_i32, %c0_i32_0 : i32, i32, i32
  }
}

</mosaic_0001>

<llo_original>
// kernel: spatial_attention.1
$region0: #{spatial_attention.1}
  #allocation0 [shape = 'u32[]', space=smem, size = 0x4, offset = 0x4, fixed_abs, tag = 'smem constant byte address 0x4 - core index']
  #allocation1 [shape = 'u32[144,128]{1,0:T(1,128)}', space=vmem, size = 0x12000, scoped, tag = 'internal scratch']
  #allocation2 [shape = 'f32[2,512]{1,0:T(2,128)}', space=vmem, size = 0x1000, scoped, tag = 'scratch operand']
  #allocation3 [shape = 'f32[2,512]{1,0:T(2,128)}', space=vmem, size = 0x1000, scoped, tag = 'scratch operand']
  %s0 = inlined_call_operand.vmem [shape: f32[2,128], index: 0, kind: input, shape index: {}]
  %s1 = inlined_call_operand.vmem [shape: f32[2], index: 1, kind: input, shape index: {}]
  %s2 = inlined_call_operand.vmem [shape: s32[2,256], index: 2, kind: input, shape index: {}]
  %s3 = inlined_call_operand.vmem [shape: f32[2,4,256], index: 3, kind: input, shape index: {}]
  %s4 = inlined_call_operand.vmem [shape: f32[2,4,256], index: 4, kind: output, shape index: {}]
  %s5 = sld [smem:[#allocation0]]
  $region53: #{spatial_attention.1} parent=0
    _
  %s7 = ssub.s32 1, %s5
  %s8 = scalar_select 0, %s7, %s5
  $region1: #{spatial_attention.1} parent=0
    #allocation4 [shape = 'u8[512]{0}', space=smem, size = 0x200, scoped, tag = 'input window, operand 1, single buffered']
    #allocation5 [shape = 's32[2]{0}', space=sflag, size = 0x8, scoped, tag = 'scoped memory for spatial_attention.1']
    %9 = vsyncpa [#allocation5], 0
    loop: start=0, step=1, limit=4
    $region2: #{spatial_attention.1} parent=1 // loop_pre_header
      _
    $region3: #{spatial_attention.1} parent=1 // loop_header
      %s11 = sphi 0, %s15
      %p12 = scmp.ge.s32.totalorder %s11, 4
      %s19 = sphi 0, %s19
      %s21 = sphi 0, %s19
      %s22 = sphi 0, %s21
      %s36 = sphi 0, %s22
      %s40 = sphi 0, %s40
      %s42 = sphi 0, %s40
      %s43 = sphi 0, %s42
      %s57 = sphi 0, %s43
      %s61 = sphi 0, %s61
      %s63 = sphi 0, %s61
      %s64 = sphi 0, %s63
      %s78 = sphi 0, %s64
      %s84 = sphi 0, %s86
      %s87 = sphi 0, %s84
      %s88 = sphi 0, %s87
      %s104 = sphi 0, %s88
      %s110 = sphi 0, %s112
      %s113 = sphi 0, %s110
      %s114 = sphi 0, %s113
      %s130 = sphi 0, %s114
    $region4: #{spatial_attention.1} parent=1 // loop_header_branch
      %14 = sbr.rel (%p12) target = $region8
    $region5: #{spatial_attention.1} parent=1 // loop_body
      %s16 = ssub.s32 %s11, 1
      %s17 = ssub.s32 %s11, 2
      %s18 = sadd.s32 %s11, 1
      %s20 = sadd.s32 %s19, 1
      %p23 = scmp.eq.s32.totalorder %s11, 1
      %p24 = scmp.ne.s32.totalorder %s19, %s21
      %p25 = scmp.eq.s32.totalorder %s11, 0
      %p26 = por %p24, %p25
      %p27 = scmp.ne.s32.totalorder %s19, %s21
      %p28 = scmp.eq.s32.totalorder %s16, 1
      %p29 = por %p27, %p28
      %p30 = scmp.ne.s32.totalorder %s21, %s22
      %p31 = scmp.eq.s32.totalorder %s16, 0
      %p32 = por %p30, %p31
      %p33 = scmp.ne.s32.totalorder %s21, %s22
      %p34 = scmp.eq.s32.totalorder %s17, 1
      %p35 = por %p33, %p34
      %p37 = scmp.ne.s32.totalorder %s22, %s36
      %p38 = scmp.eq.s32.totalorder %s17, 0
      %p39 = por %p37, %p38
      %s41 = sadd.s32 %s40, 1
      %p44 = scmp.eq.s32.totalorder %s11, 1
      %p45 = scmp.ne.s32.totalorder %s40, %s42
      %p46 = scmp.eq.s32.totalorder %s11, 0
      %p47 = por %p45, %p46
      %p48 = scmp.ne.s32.totalorder %s40, %s42
      %p49 = scmp.eq.s32.totalorder %s16, 1
      %p50 = por %p48, %p49
      %p51 = scmp.ne.s32.totalorder %s42, %s43
      %p52 = scmp.eq.s32.totalorder %s16, 0
      %p53 = por %p51, %p52
      %p54 = scmp.ne.s32.totalorder %s42, %s43
      %p55 = scmp.eq.s32.totalorder %s17, 1
      %p56 = por %p54, %p55
      %p58 = scmp.ne.s32.totalorder %s43, %s57
      %p59 = scmp.eq.s32.totalorder %s17, 0
      %p60 = por %p58, %p59
      %s62 = sadd.s32 %s61, 1
      %p65 = scmp.eq.s32.totalorder %s11, 1
      %p66 = scmp.ne.s32.totalorder %s61, %s63
      %p67 = scmp.eq.s32.totalorder %s11, 0
      %p68 = por %p66, %p67
      %p69 = scmp.ne.s32.totalorder %s61, %s63
      %p70 = scmp.eq.s32.totalorder %s16, 1
      %p71 = por %p69, %p70
      %p72 = scmp.ne.s32.totalorder %s63, %s64
      %p73 = scmp.eq.s32.totalorder %s16, 0
      %p74 = por %p72, %p73
      %p75 = scmp.ne.s32.totalorder %s63, %s64
      %p76 = scmp.eq.s32.totalorder %s17, 1
      %p77 = por %p75, %p76
      %p79 = scmp.ne.s32.totalorder %s64, %s78
      %p80 = scmp.eq.s32.totalorder %s17, 0
      %p81 = por %p79, %p80
      %s82 = ssub.s32 %s11, %s18
      %p83 = scmp.eq.s32.totalorder %s82, 0
      %s85 = sadd.s32 %s84, 1
      %s86 = scalar_select %p83, %s84, %s85
      %p89 = pneg %p83
      %p90 = scmp.eq.s32.totalorder %s11, 1
      %p91 = por %p89, %p90
      %p92 = scmp.ne.s32.totalorder %s84, %s87
      %p93 = scmp.eq.s32.totalorder %s11, 0
      %p94 = por %p92, %p93
      %p95 = scmp.ne.s32.totalorder %s84, %s87
      %p96 = scmp.eq.s32.totalorder %s16, 1
      %p97 = por %p95, %p96
      %p98 = scmp.ne.s32.totalorder %s87, %s88
      %p99 = scmp.eq.s32.totalorder %s16, 0
      %p100 = por %p98, %p99
      %p101 = scmp.ne.s32.totalorder %s87, %s88
      %p102 = scmp.eq.s32.totalorder %s17, 1
      %p103 = por %p101, %p102
      %p105 = scmp.ne.s32.totalorder %s88, %s104
      %p106 = scmp.eq.s32.totalorder %s17, 0
      %p107 = por %p105, %p106
      %s108 = ssub.s32 %s11, %s18
      %p109 = scmp.eq.s32.totalorder %s108, 0
      %s111 = sadd.s32 %s110, 1
      %s112 = scalar_select %p109, %s110, %s111
      %p115 = pneg %p109
      %p116 = scmp.eq.s32.totalorder %s11, 1
      %p117 = por %p115, %p116
      %p118 = scmp.ne.s32.totalorder %s110, %s113
      %p119 = scmp.eq.s32.totalorder %s11, 0
      %p120 = por %p118, %p119
      %p121 = scmp.ne.s32.totalorder %s110, %s113
      %p122 = scmp.eq.s32.totalorder %s16, 1
      %p123 = por %p121, %p122
      %p124 = scmp.ne.s32.totalorder %s113, %s114
      %p125 = scmp.eq.s32.totalorder %s16, 0
      %p126 = por %p124, %p125
      %p127 = scmp.ne.s32.totalorder %s113, %s114
      %p128 = scmp.eq.s32.totalorder %s17, 1
      %p129 = por %p127, %p128
      %p131 = scmp.ne.s32.totalorder %s114, %s130
      %p132 = scmp.eq.s32.totalorder %s17, 0
      %p133 = por %p131, %p132
      %p134 = scmp.le.s32.totalorder 1, %s11
      %p135 = scmp.lt.s32.totalorder %s11, 3
      %p136 = pnand %p134, %p135
      %p137 = pneg %p136
      // Predicated region
      $region9: #{spatial_attention.1} parent=5 // pred_check
        _
      $region10: #{spatial_attention.1} parent=5 // pred_check_branch
        %139 = sbr.rel (%p136) target = $region12
      $region11: #{spatial_attention.1} parent=5 // pred_region
        %s140 = ssub.s32 %s11, 1
        // Predicated region
        $region13: #{spatial_attention.1} parent=11 // pred_check
          %p141 = pneg %p32
        $region14: #{spatial_attention.1} parent=11 // pred_check_branch
          %143 = sbr.rel (%p141) target = $region16
        $region15: #{spatial_attention.1} parent=11 // pred_region
          _
        $region16: #{spatial_attention.1} parent=11 // pred_fallthru
          _
        // Predicated region
        $region17: #{spatial_attention.1} parent=11 // pred_check
          %p144 = pneg %p53
        $region18: #{spatial_attention.1} parent=11 // pred_check_branch
          %146 = sbr.rel (%p144) target = $region20
        $region19: #{spatial_attention.1} parent=11 // pred_region
          %s148 = ssub.s32 16, 16
          %149 = vsyncadd [#allocation5], %s148
          %s151 = sshll.u32 %s1, 4
          %s152 = int_to_ptr.vmem [resolvable:$true] %s151
          %154 = dma.vmem_to_smem %s152, 16, [#allocation4], [#allocation5]
        $region20: #{spatial_attention.1} parent=11 // pred_fallthru
          _
        // Predicated region
        $region21: #{spatial_attention.1} parent=11 // pred_check
          %p155 = pneg %p74
        $region22: #{spatial_attention.1} parent=11 // pred_check_branch
          %157 = sbr.rel (%p155) target = $region24
        $region23: #{spatial_attention.1} parent=11 // pred_region
          _
        $region24: #{spatial_attention.1} parent=11 // pred_fallthru
          _
      $region12: #{spatial_attention.1} parent=5 // pred_fallthru
        _
      %p158 = scmp.lt.s32.totalorder %s11, 2
      // Predicated region
      $region25: #{spatial_attention.1} parent=5 // pred_check
        %p159 = pneg %p158
      $region26: #{spatial_attention.1} parent=5 // pred_check_branch
        %161 = sbr.rel (%p159) target = $region28
      $region27: #{spatial_attention.1} parent=5 // pred_region
        // Predicated region
        $region29: #{spatial_attention.1} parent=27 // pred_check
          %p162 = pneg %p94
        $region30: #{spatial_attention.1} parent=27 // pred_check_branch
          %164 = sbr.rel (%p162) target = $region32
        $region31: #{spatial_attention.1} parent=27 // pred_region
          %p165 = scmp.lt.s32.totalorder %s11, 1
          %s166 = scalar_select %p165, %s11, 1
          %s167 = smul.addr %s166, 2
          %s168 = smul.addr %s167, 4
          %s169 = scalar_lea.vmem %s3, %s168
        $region32: #{spatial_attention.1} parent=27 // pred_fallthru
          _
      $region28: #{spatial_attention.1} parent=5 // pred_fallthru
        _
      %p170 = scmp.le.s32.totalorder 1, %s11
      %p171 = scmp.lt.s32.totalorder %s11, 3
      %p172 = pnand %p170, %p171
      %p173 = pneg %p172
      // Predicated region
      $region33: #{spatial_attention.1} parent=5 // pred_check
        _
      $region34: #{spatial_attention.1} parent=5 // pred_check_branch
        %175 = sbr.rel (%p172) target = $region36
      $region35: #{spatial_attention.1} parent=5 // pred_region
        %s176 = ssub.s32 %s11, 1
        // Predicated region
        $region37: #{spatial_attention.1} parent=35 // pred_check
          %p177 = pneg %p53
        $region38: #{spatial_attention.1} parent=35 // pred_check_branch
          %179 = sbr.rel (%p177) target = $region40
        $region39: #{spatial_attention.1} parent=35 // pred_region
          %180 = dma.done [#allocation5], 16
        $region40: #{spatial_attention.1} parent=35 // pred_fallthru
          _
        %181 = sfence
        %p182 = pneg %p32
        %p183 = pneg %p29
        %p184 = pneg %p53
        %p185 = pneg %p50
        %p186 = pneg %p74
        %p187 = pneg %p71
        %p188 = scmp.lt.s32.totalorder %s16, 1
        %s189 = scalar_select %p188, %s16, 1
        %s190 = smul.addr %s189, 2
        %s191 = smul.addr %s190, 4
        %s192 = scalar_lea.vmem %s3, %s191
        %p193 = pneg %p100
        %p194 = pneg %p97
        %p195 = pneg %p126
        %p196 = pneg %p123
        %p197 = scmp.lt.s32.totalorder %s16, 1
        %s198 = scalar_select %p197, %s16, 1
        %s199 = smul.addr %s198, 2
        %s200 = smul.addr %s199, 4
        %s201 = scalar_lea.vmem %s4, %s200
        %p202 = scmp.lt.s32.totalorder %s16, 1
        %s203 = scalar_select %p202, %s16, 1
        %s204 = smul.addr %s203, 2
        %s205 = smul.addr %s204, 4
        %s206 = scalar_lea.vmem %s3, %s205
        %p207 = scmp.lt.s32.totalorder %s16, 1
        %s208 = scalar_select %p207, %s16, 1
        %s209 = smul.addr %s208, 2
        %s210 = smul.addr %s209, 4
        %s211 = scalar_lea.vmem %s4, %s210
        %v212 = vld [vmem:[%s206] sm:$0xff]
        %v214 = vcombine.high %v212, %v212
        %vm216 = vcmask 1043456
        %v217 = vsel %vm216, %v212, 0.0
        %v218 = vrot.slane %v217, 4
        %v219 = vadd.f32 %v217, %v218
        %v220 = vrot.slane %v219, 2
        %v221 = vadd.f32 %v219, %v220
        %v222 = vrot.slane %v221, 1
        %v223 = vadd.f32 %v221, %v222
        %v224 = vsel %vm216, %v214, 0.0
        %v225 = vrot.slane %v224, 4
        %v226 = vadd.f32 %v224, %v225
        %v227 = vrot.slane %v226, 2
        %v228 = vadd.f32 %v226, %v227
        %v229 = vrot.slane %v228, 1
        %v230 = vadd.f32 %v228, %v229
        %v231 = vsel %vm216, %v212, -inf
        %v232 = vrot.slane %v231, 4
        %v233 = vmax.f32 %v231, %v232
        %v234 = vrot.slane %v233, 2
        %v235 = vmax.f32 %v233, %v234
        %v236 = vrot.slane %v235, 1
        %v237 = vmax.f32 %v235, %v236
        %v238 = vsel %vm216, %v214, -inf
        %v239 = vrot.slane %v238, 4
        %v240 = vmax.f32 %v238, %v239
        %v241 = vrot.slane %v240, 2
        %v242 = vmax.f32 %v240, %v241
        %v243 = vrot.slane %v242, 1
        %v244 = vmax.f32 %v242, %v243
        %v245 = vmul.f32 %v223, 0.25
        %v246 = vmul.f32 %v230, 0.25
        %247 = vst [vmem:[#allocation2] sm:$0x3] 0.0
        %248 = vst [vmem:[#allocation2 + $0x6] sm:$0x3] 0.0
        %249 = vst [vmem:[#allocation3] sm:$0x3] 0.0
        %250 = vst [vmem:[#allocation3 + $0x6] sm:$0x3] 0.0
        %vm251 = vcmask 1040384
        %v252 = vsel %vm251, %v245, %v237
        %v253 = vsel %vm251, %v246, %v244
        %v256 = vcombine.low %v252, %v253
        %v258 = vunpack.c.l.s4 1983009808
        %v259 = vunpack.c.0.s8 %v258
        %v260 = vlaneseq
        %v261 = vshrl.u32 %v260, 7
        %v262 = vsub.s32 %v259, %v261
        %v263 = vrot.slane %v256, %v262
        %265 = vst [vmem:[#allocation2 + $0x2] sm:$0xf] %v263
        %v266 = vld [vmem:[%s0] sm:$0x3]
        %v267 = vld [vmem:[%s2] sm:$0xf]
        %v268 = vadd.s32 %v267, 4294967293
        %vm269 = vcmp.ge.s32.totalorder %v268, 0
        %vm270 = vcmp.lt.s32.totalorder %v268, 16
        %vm271 = vmand %vm269, %vm270
        %v272 = vld [vmem:[#allocation2] sm:$0x3f]
        %274 = vrot.lane.b32.xlu0 %v272, 3
        %v275 = vpop.permute.xlu0 %274
        %v276 = vrot.slane %v275, 2
        %vm277 = vcmask 23552
        %v278 = vsel %vm277, %v275, %v276
        %v280 = vsel %vm271, %v278, 0.0
        %281 = vst [vmem:[#allocation3 + $0x2] sm:$0xf] %v280
        %v282 = vld [vmem:[#allocation3] sm:$0x3f]
        %284 = vset.pattern.permute.xlu0 0
        %285 = vperm.xlu0 %284, %v266
        %v286 = vpop.permute.xlu0 %285
        %v289 = vcombine.high %v282, %v282
        %v291 = vunpack.c.l.s4 1983009808
        %v292 = vunpack.c.0.s8 %v291
        %v293 = vlaneseq
        %v294 = vshrl.u32 %v293, 7
        %v295 = vsub.s32 %v292, %v294
        %v296 = vrot.slane %v282, %v295
        %v298 = vunpack.c.l.s4 1983009808
        %v299 = vunpack.c.0.s8 %v298
        %v300 = vlaneseq
        %v301 = vshrl.u32 %v300, 7
        %v302 = vsub.s32 %v299, %v301
        %v303 = vrot.slane %v289, %v302
        %v304 = vcombine.high %v296, %v296
        %305 = vrot.lane.b32.xlu0 %v296, 48
        %v306 = vpop.permute.xlu0 %305
        %307 = vrot.lane.b32.xlu0 %v304, 48
        %v308 = vpop.permute.xlu0 %307
        %309 = vrot.lane.b32.xlu0 %v303, 48
        %v310 = vpop.permute.xlu0 %309
        %vm311 = vcmask 392192
        %v312 = vsel %vm311, %v306, %v308
        %v313 = vsel %vm311, %v308, %v310
        %v316 = vmul.f32 %v286, %v312
        %v317 = vmul.f32 %v286, %v313
        %v318 = vadd.f32 %v316, 0.0
        %v319 = vadd.f32 %v317, 0.0
        %v320 = vld [vmem:[#allocation3] sm:$0x3f]
        %321 = vset.pattern.permute.xlu0 7
        %322 = vperm.xlu0 %321, %v266
        %v323 = vpop.permute.xlu0 %322
        %v326 = vcombine.high %v320, %v320
        %v328 = vunpack.c.l.s4 1983009808
        %v329 = vunpack.c.0.s8 %v328
        %v330 = vlaneseq
        %v331 = vshrl.u32 %v330, 7
        %v332 = vsub.s32 %v329, %v331
        %v333 = vrot.slane %v320, %v332
        %v335 = vunpack.c.l.s4 1983009808
        %v336 = vunpack.c.0.s8 %v335
        %v337 = vlaneseq
        %v338 = vshrl.u32 %v337, 7
        %v339 = vsub.s32 %v336, %v338
        %v340 = vrot.slane %v326, %v339
        %v341 = vcombine.high %v333, %v333
        %342 = vrot.lane.b32.xlu0 %v333, 32
        %v343 = vpop.permute.xlu0 %342
        %344 = vrot.lane.b32.xlu0 %v341, 32
        %v345 = vpop.permute.xlu0 %344
        %346 = vrot.lane.b32.xlu0 %v340, 32
        %v347 = vpop.permute.xlu0 %346
        %vm348 = vcmask 261120
        %v349 = vsel %vm348, %v343, %v345
        %v350 = vsel %vm348, %v345, %v347
        %v353 = vmul.f32 %v323, %v349
        %v354 = vmul.f32 %v323, %v350
        %v355 = vadd.f32 %v318, %v353
        %v356 = vadd.f32 %v319, %v354
        %v357 = vld [vmem:[#allocation3] sm:$0x3f]
        %358 = vset.pattern.permute.xlu0 14
        %359 = vperm.xlu0 %358, %v266
        %v360 = vpop.permute.xlu0 %359
        %v363 = vcombine.high %v357, %v357
        %v365 = vunpack.c.l.s4 1983009808
        %v366 = vunpack.c.0.s8 %v365
        %v367 = vlaneseq
        %v368 = vshrl.u32 %v367, 7
        %v369 = vsub.s32 %v366, %v368
        %v370 = vrot.slane %v357, %v369
        %v372 = vunpack.c.l.s4 1983009808
        %v373 = vunpack.c.0.s8 %v372
        %v374 = vlaneseq
        %v375 = vshrl.u32 %v374, 7
        %v376 = vsub.s32 %v373, %v375
        %v377 = vrot.slane %v363, %v376
        %v378 = vcombine.high %v370, %v370
        %379 = vrot.lane.b32.xlu0 %v370, 16
        %v380 = vpop.permute.xlu0 %379
        %381 = vrot.lane.b32.xlu0 %v378, 16
        %v382 = vpop.permute.xlu0 %381
        %383 = vrot.lane.b32.xlu0 %v377, 16
        %v384 = vpop.permute.xlu0 %383
        %vm385 = vcmask 130048
        %v386 = vsel %vm385, %v380, %v382
        %v387 = vsel %vm385, %v382, %v384
        %v390 = vmul.f32 %v360, %v386
        %v391 = vmul.f32 %v360, %v387
        %v392 = vadd.f32 %v355, %v390
        %v393 = vadd.f32 %v356, %v391
        %v394 = vld [vmem:[#allocation3 + $0x2] sm:$0xf]
        %395 = vset.pattern.permute.xlu0 21
        %396 = vperm.xlu0 %395, %v266
        %v397 = vpop.permute.xlu0 %396
        %v401 = vunpack.c.l.s4 1983009808
        %v402 = vunpack.c.0.s8 %v401
        %v403 = vlaneseq
        %v404 = vshrl.u32 %v403, 7
        %v405 = vsub.s32 %v402, %v404
        %v406 = vrot.slane %v394, %v405
        %v407 = vcombine.high %v406, %v406
        %v410 = vmul.f32 %v397, %v406
        %v411 = vmul.f32 %v397, %v407
        %v412 = vadd.f32 %v392, %v410
        %v413 = vadd.f32 %v393, %v411
        %v414 = vld [vmem:[#allocation3 + $0x2] sm:$0x3f]
        %415 = vset.pattern.permute.xlu0 28
        %416 = vperm.xlu0 %415, %v266
        %v417 = vpop.permute.xlu0 %416
        %v420 = vcombine.high %v414, %v414
        %v422 = vunpack.c.l.s4 1983009808
        %v423 = vunpack.c.0.s8 %v422
        %v424 = vlaneseq
        %v425 = vshrl.u32 %v424, 7
        %v426 = vsub.s32 %v423, %v425
        %v427 = vrot.slane %v414, %v426
        %v429 = vunpack.c.l.s4 1983009808
        %v430 = vunpack.c.0.s8 %v429
        %v431 = vlaneseq
        %v432 = vshrl.u32 %v431, 7
        %v433 = vsub.s32 %v430, %v432
        %v434 = vrot.slane %v420, %v433
        %v435 = vcombine.high %v427, %v427
        %436 = vrot.lane.b32.xlu0 %v427, 112
        %v437 = vpop.permute.xlu0 %436
        %438 = vrot.lane.b32.xlu0 %v435, 112
        %v439 = vpop.permute.xlu0 %438
        %440 = vrot.lane.b32.xlu0 %v434, 112
        %v441 = vpop.permute.xlu0 %440
        %vm442 = vcmask 916480
        %v443 = vsel %vm442, %v437, %v439
        %v444 = vsel %vm442, %v439, %v441
        %v447 = vmul.f32 %v417, %v443
        %v448 = vmul.f32 %v417, %v444
        %v449 = vadd.f32 %v412, %v447
        %v450 = vadd.f32 %v413, %v448
        %v451 = vld [vmem:[#allocation3 + $0x2] sm:$0x3f]
        %452 = vset.pattern.permute.xlu0 35
        %453 = vperm.xlu0 %452, %v266
        %v454 = vpop.permute.xlu0 %453
        %v457 = vcombine.high %v451, %v451
        %v459 = vunpack.c.l.s4 1983009808
        %v460 = vunpack.c.0.s8 %v459
        %v461 = vlaneseq
        %v462 = vshrl.u32 %v461, 7
        %v463 = vsub.s32 %v460, %v462
        %v464 = vrot.slane %v451, %v463
        %v466 = vunpack.c.l.s4 1983009808
        %v467 = vunpack.c.0.s8 %v466
        %v468 = vlaneseq
        %v469 = vshrl.u32 %v468, 7
        %v470 = vsub.s32 %v467, %v469
        %v471 = vrot.slane %v457, %v470
        %v472 = vcombine.high %v464, %v464
        %473 = vrot.lane.b32.xlu0 %v464, 96
        %v474 = vpop.permute.xlu0 %473
        %475 = vrot.lane.b32.xlu0 %v472, 96
        %v476 = vpop.permute.xlu0 %475
        %477 = vrot.lane.b32.xlu0 %v471, 96
        %v478 = vpop.permute.xlu0 %477
        %vm479 = vcmask 785408
        %v480 = vsel %vm479, %v474, %v476
        %v481 = vsel %vm479, %v476, %v478
        %v484 = vmul.f32 %v454, %v480
        %v485 = vmul.f32 %v454, %v481
        %v486 = vadd.f32 %v449, %v484
        %v487 = vadd.f32 %v450, %v485
        %v488 = vld [vmem:[#allocation3 + $0x2] sm:$0x3f]
        %489 = vset.pattern.permute.xlu0 42
        %490 = vperm.xlu0 %489, %v266
        %v491 = vpop.permute.xlu0 %490
        %v494 = vcombine.high %v488, %v488
        %v496 = vunpack.c.l.s4 1983009808
        %v497 = vunpack.c.0.s8 %v496
        %v498 = vlaneseq
        %v499 = vshrl.u32 %v498, 7
        %v500 = vsub.s32 %v497, %v499
        %v501 = vrot.slane %v488, %v500
        %v503 = vunpack.c.l.s4 1983009808
        %v504 = vunpack.c.0.s8 %v503
        %v505 = vlaneseq
        %v506 = vshrl.u32 %v505, 7
        %v507 = vsub.s32 %v504, %v506
        %v508 = vrot.slane %v494, %v507
        %v509 = vcombine.high %v501, %v501
        %510 = vrot.lane.b32.xlu0 %v501, 80
        %v511 = vpop.permute.xlu0 %510
        %512 = vrot.lane.b32.xlu0 %v509, 80
        %v513 = vpop.permute.xlu0 %512
        %514 = vrot.lane.b32.xlu0 %v508, 80
        %v515 = vpop.permute.xlu0 %514
        %vm516 = vcmask 654336
        %v517 = vsel %vm516, %v511, %v513
        %v518 = vsel %vm516, %v513, %v515
        %v521 = vmul.f32 %v491, %v517
        %v522 = vmul.f32 %v491, %v518
        %v523 = vadd.f32 %v486, %v521
        %v524 = vadd.f32 %v487, %v522
        %v525 = vadd.s32 %v267, 4294967294
        %vm526 = vcmp.ge.s32.totalorder %v525, 0
        %vm527 = vcmp.lt.s32.totalorder %v525, 16
        %vm528 = vmand %vm526, %vm527
        %v529 = vld [vmem:[#allocation2] sm:$0x3f]
        %531 = vrot.lane.b32.xlu0 %v529, 2
        %v532 = vpop.permute.xlu0 %531
        %v533 = vrot.slane %v532, 2
        %vm534 = vcmask 15360
        %v535 = vsel %vm534, %v532, %v533
        %v537 = vsel %vm528, %v535, 0.0
        %538 = vst [vmem:[#allocation3 + $0x2] sm:$0xf] %v537
        %v539 = vld [vmem:[#allocation3] sm:$0x3f]
        %540 = vset.pattern.permute.xlu0 1
        %541 = vperm.xlu0 %540, %v266
        %v542 = vpop.permute.xlu0 %541
        %v545 = vcombine.high %v539, %v539
        %v547 = vunpack.c.l.s4 1983009808
        %v548 = vunpack.c.0.s8 %v547
        %v549 = vlaneseq
        %v550 = vshrl.u32 %v549, 7
        %v551 = vsub.s32 %v548, %v550
        %v552 = vrot.slane %v539, %v551
        %v554 = vunpack.c.l.s4 1983009808
        %v555 = vunpack.c.0.s8 %v554
        %v556 = vlaneseq
        %v557 = vshrl.u32 %v556, 7
        %v558 = vsub.s32 %v555, %v557
        %v559 = vrot.slane %v545, %v558
        %v560 = vcombine.high %v552, %v552
        %561 = vrot.lane.b32.xlu0 %v552, 48
        %v562 = vpop.permute.xlu0 %561
        %563 = vrot.lane.b32.xlu0 %v560, 48
        %v564 = vpop.permute.xlu0 %563
        %565 = vrot.lane.b32.xlu0 %v559, 48
        %v566 = vpop.permute.xlu0 %565
        %v567 = vsel %vm311, %v562, %v564
        %v568 = vsel %vm311, %v564, %v566
        %v571 = vmul.f32 %v542, %v567
        %v572 = vmul.f32 %v542, %v568
        %v573 = vadd.f32 %v523, %v571
        %v574 = vadd.f32 %v524, %v572
        %v575 = vld [vmem:[#allocation3] sm:$0x3f]
        %576 = vset.pattern.permute.xlu0 8
        %577 = vperm.xlu0 %576, %v266
        %v578 = vpop.permute.xlu0 %577
        %v581 = vcombine.high %v575, %v575
        %v583 = vunpack.c.l.s4 1983009808
        %v584 = vunpack.c.0.s8 %v583
        %v585 = vlaneseq
        %v586 = vshrl.u32 %v585, 7
        %v587 = vsub.s32 %v584, %v586
        %v588 = vrot.slane %v575, %v587
        %v590 = vunpack.c.l.s4 1983009808
        %v591 = vunpack.c.0.s8 %v590
        %v592 = vlaneseq
        %v593 = vshrl.u32 %v592, 7
        %v594 = vsub.s32 %v591, %v593
        %v595 = vrot.slane %v581, %v594
        %v596 = vcombine.high %v588, %v588
        %597 = vrot.lane.b32.xlu0 %v588, 32
        %v598 = vpop.permute.xlu0 %597
        %599 = vrot.lane.b32.xlu0 %v596, 32
        %v600 = vpop.permute.xlu0 %599
        %601 = vrot.lane.b32.xlu0 %v595, 32
        %v602 = vpop.permute.xlu0 %601
        %v603 = vsel %vm348, %v598, %v600
        %v604 = vsel %vm348, %v600, %v602
        %v607 = vmul.f32 %v578, %v603
        %v608 = vmul.f32 %v578, %v604
        %v609 = vadd.f32 %v573, %v607
        %v610 = vadd.f32 %v574, %v608
        %v611 = vld [vmem:[#allocation3] sm:$0x3f]
        %612 = vset.pattern.permute.xlu0 15
        %613 = vperm.xlu0 %612, %v266
        %v614 = vpop.permute.xlu0 %613
        %v617 = vcombine.high %v611, %v611
        %v619 = vunpack.c.l.s4 1983009808
        %v620 = vunpack.c.0.s8 %v619
        %v621 = vlaneseq
        %v622 = vshrl.u32 %v621, 7
        %v623 = vsub.s32 %v620, %v622
        %v624 = vrot.slane %v611, %v623
        %v626 = vunpack.c.l.s4 1983009808
        %v627 = vunpack.c.0.s8 %v626
        %v628 = vlaneseq
        %v629 = vshrl.u32 %v628, 7
        %v630 = vsub.s32 %v627, %v629
        %v631 = vrot.slane %v617, %v630
        %v632 = vcombine.high %v624, %v624
        %633 = vrot.lane.b32.xlu0 %v624, 16
        %v634 = vpop.permute.xlu0 %633
        %635 = vrot.lane.b32.xlu0 %v632, 16
        %v636 = vpop.permute.xlu0 %635
        %637 = vrot.lane.b32.xlu0 %v631, 16
        %v638 = vpop.permute.xlu0 %637
        %v639 = vsel %vm385, %v634, %v636
        %v640 = vsel %vm385, %v636, %v638
        %v643 = vmul.f32 %v614, %v639
        %v644 = vmul.f32 %v614, %v640
        %v645 = vadd.f32 %v609, %v643
        %v646 = vadd.f32 %v610, %v644
        %v647 = vld [vmem:[#allocation3 + $0x2] sm:$0xf]
        %648 = vset.pattern.permute.xlu0 22
        %649 = vperm.xlu0 %648, %v266
        %v650 = vpop.permute.xlu0 %649
        %v654 = vunpack.c.l.s4 1983009808
        %v655 = vunpack.c.0.s8 %v654
        %v656 = vlaneseq
        %v657 = vshrl.u32 %v656, 7
        %v658 = vsub.s32 %v655, %v657
        %v659 = vrot.slane %v647, %v658
        %v660 = vcombine.high %v659, %v659
        %v663 = vmul.f32 %v650, %v659
        %v664 = vmul.f32 %v650, %v660
        %v665 = vadd.f32 %v645, %v663
        %v666 = vadd.f32 %v646, %v664
        %v667 = vld [vmem:[#allocation3 + $0x2] sm:$0x3f]
        %668 = vset.pattern.permute.xlu0 29
        %669 = vperm.xlu0 %668, %v266
        %v670 = vpop.permute.xlu0 %669
        %v673 = vcombine.high %v667, %v667
        %v675 = vunpack.c.l.s4 1983009808
        %v676 = vunpack.c.0.s8 %v675
        %v677 = vlaneseq
        %v678 = vshrl.u32 %v677, 7
        %v679 = vsub.s32 %v676, %v678
        %v680 = vrot.slane %v667, %v679
        %v682 = vunpack.c.l.s4 1983009808
        %v683 = vunpack.c.0.s8 %v682
        %v684 = vlaneseq
        %v685 = vshrl.u32 %v684, 7
        %v686 = vsub.s32 %v683, %v685
        %v687 = vrot.slane %v673, %v686
        %v688 = vcombine.high %v680, %v680
        %689 = vrot.lane.b32.xlu0 %v680, 112
        %v690 = vpop.permute.xlu0 %689
        %691 = vrot.lane.b32.xlu0 %v688, 112
        %v692 = vpop.permute.xlu0 %691
        %693 = vrot.lane.b32.xlu0 %v687, 112
        %v694 = vpop.permute.xlu0 %693
        %v695 = vsel %vm442, %v690, %v692
        %v696 = vsel %vm442, %v692, %v694
        %v699 = vmul.f32 %v670, %v695
        %v700 = vmul.f32 %v670, %v696
        %v701 = vadd.f32 %v665, %v699
        %v702 = vadd.f32 %v666, %v700
        %v703 = vld [vmem:[#allocation3 + $0x2] sm:$0x3f]
        %704 = vset.pattern.permute.xlu0 36
        %705 = vperm.xlu0 %704, %v266
        %v706 = vpop.permute.xlu0 %705
        %v709 = vcombine.high %v703, %v703
        %v711 = vunpack.c.l.s4 1983009808
        %v712 = vunpack.c.0.s8 %v711
        %v713 = vlaneseq
        %v714 = vshrl.u32 %v713, 7
        %v715 = vsub.s32 %v712, %v714
        %v716 = vrot.slane %v703, %v715
        %v718 = vunpack.c.l.s4 1983009808
        %v719 = vunpack.c.0.s8 %v718
        %v720 = vlaneseq
        %v721 = vshrl.u32 %v720, 7
        %v722 = vsub.s32 %v719, %v721
        %v723 = vrot.slane %v709, %v722
        %v724 = vcombine.high %v716, %v716
        %725 = vrot.lane.b32.xlu0 %v716, 96
        %v726 = vpop.permute.xlu0 %725
        %727 = vrot.lane.b32.xlu0 %v724, 96
        %v728 = vpop.permute.xlu0 %727
        %729 = vrot.lane.b32.xlu0 %v723, 96
        %v730 = vpop.permute.xlu0 %729
        %v731 = vsel %vm479, %v726, %v728
        %v732 = vsel %vm479, %v728, %v730
        %v735 = vmul.f32 %v706, %v731
        %v736 = vmul.f32 %v706, %v732
        %v737 = vadd.f32 %v701, %v735
        %v738 = vadd.f32 %v702, %v736
        %v739 = vld [vmem:[#allocation3 + $0x2] sm:$0x3f]
        %740 = vset.pattern.permute.xlu0 43
        %741 = vperm.xlu0 %740, %v266
        %v742 = vpop.permute.xlu0 %741
        %v745 = vcombine.high %v739, %v739
        %v747 = vunpack.c.l.s4 1983009808
        %v748 = vunpack.c.0.s8 %v747
        %v749 = vlaneseq
        %v750 = vshrl.u32 %v749, 7
        %v751 = vsub.s32 %v748, %v750
        %v752 = vrot.slane %v739, %v751
        %v754 = vunpack.c.l.s4 1983009808
        %v755 = vunpack.c.0.s8 %v754
        %v756 = vlaneseq
        %v757 = vshrl.u32 %v756, 7
        %v758 = vsub.s32 %v755, %v757
        %v759 = vrot.slane %v745, %v758
        %v760 = vcombine.high %v752, %v752
        %761 = vrot.lane.b32.xlu0 %v752, 80
        %v762 = vpop.permute.xlu0 %761
        %763 = vrot.lane.b32.xlu0 %v760, 80
        %v764 = vpop.permute.xlu0 %763
        %765 = vrot.lane.b32.xlu0 %v759, 80
        %v766 = vpop.permute.xlu0 %765
        %v767 = vsel %vm516, %v762, %v764
        %v768 = vsel %vm516, %v764, %v766
        %v771 = vmul.f32 %v742, %v767
        %v772 = vmul.f32 %v742, %v768
        %v773 = vadd.f32 %v737, %v771
        %v774 = vadd.f32 %v738, %v772
        %v775 = vadd.s32 %v267, 4294967295
        %vm776 = vcmp.ge.s32.totalorder %v775, 0
        %vm777 = vcmp.lt.s32.totalorder %v775, 16
        %vm778 = vmand %vm776, %vm777
        %v779 = vld [vmem:[#allocation2] sm:$0x3f]
        %781 = vrot.lane.b32.xlu0 %v779, 1
        %v782 = vpop.permute.xlu0 %781
        %v783 = vrot.slane %v782, 2
        %vm784 = vcmask 7168
        %v785 = vsel %vm784, %v782, %v783
        %v787 = vsel %vm778, %v785, 0.0
        %788 = vst [vmem:[#allocation3 + $0x2] sm:$0xf] %v787
        %v789 = vld [vmem:[#allocation3] sm:$0x3f]
        %790 = vset.pattern.permute.xlu0 2
        %791 = vperm.xlu0 %790, %v266
        %v792 = vpop.permute.xlu0 %791
        %v795 = vcombine.high %v789, %v789
        %v797 = vunpack.c.l.s4 1983009808
        %v798 = vunpack.c.0.s8 %v797
        %v799 = vlaneseq
        %v800 = vshrl.u32 %v799, 7
        %v801 = vsub.s32 %v798, %v800
        %v802 = vrot.slane %v789, %v801
        %v804 = vunpack.c.l.s4 1983009808
        %v805 = vunpack.c.0.s8 %v804
        %v806 = vlaneseq
        %v807 = vshrl.u32 %v806, 7
        %v808 = vsub.s32 %v805, %v807
        %v809 = vrot.slane %v795, %v808
        %v810 = vcombine.high %v802, %v802
        %811 = vrot.lane.b32.xlu0 %v802, 48
        %v812 = vpop.permute.xlu0 %811
        %813 = vrot.lane.b32.xlu0 %v810, 48
        %v814 = vpop.permute.xlu0 %813
        %815 = vrot.lane.b32.xlu0 %v809, 48
        %v816 = vpop.permute.xlu0 %815
        %v817 = vsel %vm311, %v812, %v814
        %v818 = vsel %vm311, %v814, %v816
        %v821 = vmul.f32 %v792, %v817
        %v822 = vmul.f32 %v792, %v818
        %v823 = vadd.f32 %v773, %v821
        %v824 = vadd.f32 %v774, %v822
        %v825 = vld [vmem:[#allocation3] sm:$0x3f]
        %826 = vset.pattern.permute.xlu0 9
        %827 = vperm.xlu0 %826, %v266
        %v828 = vpop.permute.xlu0 %827
        %v831 = vcombine.high %v825, %v825
        %v833 = vunpack.c.l.s4 1983009808
        %v834 = vunpack.c.0.s8 %v833
        %v835 = vlaneseq
        %v836 = vshrl.u32 %v835, 7
        %v837 = vsub.s32 %v834, %v836
        %v838 = vrot.slane %v825, %v837
        %v840 = vunpack.c.l.s4 1983009808
        %v841 = vunpack.c.0.s8 %v840
        %v842 = vlaneseq
        %v843 = vshrl.u32 %v842, 7
        %v844 = vsub.s32 %v841, %v843
        %v845 = vrot.slane %v831, %v844
        %v846 = vcombine.high %v838, %v838
        %847 = vrot.lane.b32.xlu0 %v838, 32
        %v848 = vpop.permute.xlu0 %847
        %849 = vrot.lane.b32.xlu0 %v846, 32
        %v850 = vpop.permute.xlu0 %849
        %851 = vrot.lane.b32.xlu0 %v845, 32
        %v852 = vpop.permute.xlu0 %851
        %v853 = vsel %vm348, %v848, %v850
        %v854 = vsel %vm348, %v850, %v852
        %v857 = vmul.f32 %v828, %v853
        %v858 = vmul.f32 %v828, %v854
        %v859 = vadd.f32 %v823, %v857
        %v860 = vadd.f32 %v824, %v858
        %v861 = vld [vmem:[#allocation3] sm:$0x3f]
        %862 = vset.pattern.permute.xlu0 16
        %863 = vperm.xlu0 %862, %v266
        %v864 = vpop.permute.xlu0 %863
        %v867 = vcombine.high %v861, %v861
        %v869 = vunpack.c.l.s4 1983009808
        %v870 = vunpack.c.0.s8 %v869
        %v871 = vlaneseq
        %v872 = vshrl.u32 %v871, 7
        %v873 = vsub.s32 %v870, %v872
        %v874 = vrot.slane %v861, %v873
        %v876 = vunpack.c.l.s4 1983009808
        %v877 = vunpack.c.0.s8 %v876
        %v878 = vlaneseq
        %v879 = vshrl.u32 %v878, 7
        %v880 = vsub.s32 %v877, %v879
        %v881 = vrot.slane %v867, %v880
        %v882 = vcombine.high %v874, %v874
        %883 = vrot.lane.b32.xlu0 %v874, 16
        %v884 = vpop.permute.xlu0 %883
        %885 = vrot.lane.b32.xlu0 %v882, 16
        %v886 = vpop.permute.xlu0 %885
        %887 = vrot.lane.b32.xlu0 %v881, 16
        %v888 = vpop.permute.xlu0 %887
        %v889 = vsel %vm385, %v884, %v886
        %v890 = vsel %vm385, %v886, %v888
        %v893 = vmul.f32 %v864, %v889
        %v894 = vmul.f32 %v864, %v890
        %v895 = vadd.f32 %v859, %v893
        %v896 = vadd.f32 %v860, %v894
        %v897 = vld [vmem:[#allocation3 + $0x2] sm:$0xf]
        %898 = vset.pattern.permute.xlu0 23
        %899 = vperm.xlu0 %898, %v266
        %v900 = vpop.permute.xlu0 %899
        %v904 = vunpack.c.l.s4 1983009808
        %v905 = vunpack.c.0.s8 %v904
        %v906 = vlaneseq
        %v907 = vshrl.u32 %v906, 7
        %v908 = vsub.s32 %v905, %v907
        %v909 = vrot.slane %v897, %v908
        %v910 = vcombine.high %v909, %v909
        %v913 = vmul.f32 %v900, %v909
        %v914 = vmul.f32 %v900, %v910
        %v915 = vadd.f32 %v895, %v913
        %v916 = vadd.f32 %v896, %v914
        %v917 = vld [vmem:[#allocation3 + $0x2] sm:$0x3f]
        %918 = vset.pattern.permute.xlu0 30
        %919 = vperm.xlu0 %918, %v266
        %v920 = vpop.permute.xlu0 %919
        %v923 = vcombine.high %v917, %v917
        %v925 = vunpack.c.l.s4 1983009808
        %v926 = vunpack.c.0.s8 %v925
        %v927 = vlaneseq
        %v928 = vshrl.u32 %v927, 7
        %v929 = vsub.s32 %v926, %v928
        %v930 = vrot.slane %v917, %v929
        %v932 = vunpack.c.l.s4 1983009808
        %v933 = vunpack.c.0.s8 %v932
        %v934 = vlaneseq
        %v935 = vshrl.u32 %v934, 7
        %v936 = vsub.s32 %v933, %v935
        %v937 = vrot.slane %v923, %v936
        %v938 = vcombine.high %v930, %v930
        %939 = vrot.lane.b32.xlu0 %v930, 112
        %v940 = vpop.permute.xlu0 %939
        %941 = vrot.lane.b32.xlu0 %v938, 112
        %v942 = vpop.permute.xlu0 %941
        %943 = vrot.lane.b32.xlu0 %v937, 112
        %v944 = vpop.permute.xlu0 %943
        %v945 = vsel %vm442, %v940, %v942
        %v946 = vsel %vm442, %v942, %v944
        %v949 = vmul.f32 %v920, %v945
        %v950 = vmul.f32 %v920, %v946
        %v951 = vadd.f32 %v915, %v949
        %v952 = vadd.f32 %v916, %v950
        %v953 = vld [vmem:[#allocation3 + $0x2] sm:$0x3f]
        %954 = vset.pattern.permute.xlu0 37
        %955 = vperm.xlu0 %954, %v266
        %v956 = vpop.permute.xlu0 %955
        %v959 = vcombine.high %v953, %v953
        %v961 = vunpack.c.l.s4 1983009808
        %v962 = vunpack.c.0.s8 %v961
        %v963 = vlaneseq
        %v964 = vshrl.u32 %v963, 7
        %v965 = vsub.s32 %v962, %v964
        %v966 = vrot.slane %v953, %v965
        %v968 = vunpack.c.l.s4 1983009808
        %v969 = vunpack.c.0.s8 %v968
        %v970 = vlaneseq
        %v971 = vshrl.u32 %v970, 7
        %v972 = vsub.s32 %v969, %v971
        %v973 = vrot.slane %v959, %v972
        %v974 = vcombine.high %v966, %v966
        %975 = vrot.lane.b32.xlu0 %v966, 96
        %v976 = vpop.permute.xlu0 %975
        %977 = vrot.lane.b32.xlu0 %v974, 96
        %v978 = vpop.permute.xlu0 %977
        %979 = vrot.lane.b32.xlu0 %v973, 96
        %v980 = vpop.permute.xlu0 %979
        %v981 = vsel %vm479, %v976, %v978
        %v982 = vsel %vm479, %v978, %v980
        %v985 = vmul.f32 %v956, %v981
        %v986 = vmul.f32 %v956, %v982
        %v987 = vadd.f32 %v951, %v985
        %v988 = vadd.f32 %v952, %v986
        %v989 = vld [vmem:[#allocation3 + $0x2] sm:$0x3f]
        %990 = vset.pattern.permute.xlu0 44
        %991 = vperm.xlu0 %990, %v266
        %v992 = vpop.permute.xlu0 %991
        %v995 = vcombine.high %v989, %v989
        %v997 = vunpack.c.l.s4 1983009808
        %v998 = vunpack.c.0.s8 %v997
        %v999 = vlaneseq
        %v1000 = vshrl.u32 %v999, 7
        %v1001 = vsub.s32 %v998, %v1000
        %v1002 = vrot.slane %v989, %v1001
        %v1004 = vunpack.c.l.s4 1983009808
        %v1005 = vunpack.c.0.s8 %v1004
        %v1006 = vlaneseq
        %v1007 = vshrl.u32 %v1006, 7
        %v1008 = vsub.s32 %v1005, %v1007
        %v1009 = vrot.slane %v995, %v1008
        %v1010 = vcombine.high %v1002, %v1002
        %1011 = vrot.lane.b32.xlu0 %v1002, 80
        %v1012 = vpop.permute.xlu0 %1011
        %1013 = vrot.lane.b32.xlu0 %v1010, 80
        %v1014 = vpop.permute.xlu0 %1013
        %1015 = vrot.lane.b32.xlu0 %v1009, 80
        %v1016 = vpop.permute.xlu0 %1015
        %v1017 = vsel %vm516, %v1012, %v1014
        %v1018 = vsel %vm516, %v1014, %v1016
        %v1021 = vmul.f32 %v992, %v1017
        %v1022 = vmul.f32 %v992, %v1018
        %v1023 = vadd.f32 %v987, %v1021
        %v1024 = vadd.f32 %v988, %v1022
        %vm1025 = vcmp.ge.s32.totalorder %v267, 0
        %vm1026 = vcmp.lt.s32.totalorder %v267, 16
        %vm1027 = vmand %vm1025, %vm1026
        %v1028 = vld [vmem:[#allocation2 + $0x2] sm:$0xf]
        %v1029 = vsel %vm1027, %v1028, 0.0
        %1030 = vst [vmem:[#allocation3 + $0x2] sm:$0xf] %v1029
        %v1031 = vld [vmem:[#allocation3] sm:$0x3f]
        %1032 = vset.pattern.permute.xlu0 3
        %1033 = vperm.xlu0 %1032, %v266
        %v1034 = vpop.permute.xlu0 %1033
        %v1037 = vcombine.high %v1031, %v1031
        %v1039 = vunpack.c.l.s4 1983009808
        %v1040 = vunpack.c.0.s8 %v1039
        %v1041 = vlaneseq
        %v1042 = vshrl.u32 %v1041, 7
        %v1043 = vsub.s32 %v1040, %v1042
        %v1044 = vrot.slane %v1031, %v1043
        %v1046 = vunpack.c.l.s4 1983009808
        %v1047 = vunpack.c.0.s8 %v1046
        %v1048 = vlaneseq
        %v1049 = vshrl.u32 %v1048, 7
        %v1050 = vsub.s32 %v1047, %v1049
        %v1051 = vrot.slane %v1037, %v1050
        %v1052 = vcombine.high %v1044, %v1044
        %1053 = vrot.lane.b32.xlu0 %v1044, 48
        %v1054 = vpop.permute.xlu0 %1053
        %1055 = vrot.lane.b32.xlu0 %v1052, 48
        %v1056 = vpop.permute.xlu0 %1055
        %1057 = vrot.lane.b32.xlu0 %v1051, 48
        %v1058 = vpop.permute.xlu0 %1057
        %v1059 = vsel %vm311, %v1054, %v1056
        %v1060 = vsel %vm311, %v1056, %v1058
        %v1063 = vmul.f32 %v1034, %v1059
        %v1064 = vmul.f32 %v1034, %v1060
        %v1065 = vadd.f32 %v1023, %v1063
        %v1066 = vadd.f32 %v1024, %v1064
        %v1067 = vld [vmem:[#allocation3] sm:$0x3f]
        %1068 = vset.pattern.permute.xlu0 10
        %1069 = vperm.xlu0 %1068, %v266
        %v1070 = vpop.permute.xlu0 %1069
        %v1073 = vcombine.high %v1067, %v1067
        %v1075 = vunpack.c.l.s4 1983009808
        %v1076 = vunpack.c.0.s8 %v1075
        %v1077 = vlaneseq
        %v1078 = vshrl.u32 %v1077, 7
        %v1079 = vsub.s32 %v1076, %v1078
        %v1080 = vrot.slane %v1067, %v1079
        %v1082 = vunpack.c.l.s4 1983009808
        %v1083 = vunpack.c.0.s8 %v1082
        %v1084 = vlaneseq
        %v1085 = vshrl.u32 %v1084, 7
        %v1086 = vsub.s32 %v1083, %v1085
        %v1087 = vrot.slane %v1073, %v1086
        %v1088 = vcombine.high %v1080, %v1080
        %1089 = vrot.lane.b32.xlu0 %v1080, 32
        %v1090 = vpop.permute.xlu0 %1089
        %1091 = vrot.lane.b32.xlu0 %v1088, 32
        %v1092 = vpop.permute.xlu0 %1091
        %1093 = vrot.lane.b32.xlu0 %v1087, 32
        %v1094 = vpop.permute.xlu0 %1093
        %v1095 = vsel %vm348, %v1090, %v1092
        %v1096 = vsel %vm348, %v1092, %v1094
        %v1099 = vmul.f32 %v1070, %v1095
        %v1100 = vmul.f32 %v1070, %v1096
        %v1101 = vadd.f32 %v1065, %v1099
        %v1102 = vadd.f32 %v1066, %v1100
        %v1103 = vld [vmem:[#allocation3] sm:$0x3f]
        %1104 = vset.pattern.permute.xlu0 17
        %1105 = vperm.xlu0 %1104, %v266
        %v1106 = vpop.permute.xlu0 %1105
        %v1109 = vcombine.high %v1103, %v1103
        %v1111 = vunpack.c.l.s4 1983009808
        %v1112 = vunpack.c.0.s8 %v1111
        %v1113 = vlaneseq
        %v1114 = vshrl.u32 %v1113, 7
        %v1115 = vsub.s32 %v1112, %v1114
        %v1116 = vrot.slane %v1103, %v1115
        %v1118 = vunpack.c.l.s4 1983009808
        %v1119 = vunpack.c.0.s8 %v1118
        %v1120 = vlaneseq
        %v1121 = vshrl.u32 %v1120, 7
        %v1122 = vsub.s32 %v1119, %v1121
        %v1123 = vrot.slane %v1109, %v1122
        %v1124 = vcombine.high %v1116, %v1116
        %1125 = vrot.lane.b32.xlu0 %v1116, 16
        %v1126 = vpop.permute.xlu0 %1125
        %1127 = vrot.lane.b32.xlu0 %v1124, 16
        %v1128 = vpop.permute.xlu0 %1127
        %1129 = vrot.lane.b32.xlu0 %v1123, 16
        %v1130 = vpop.permute.xlu0 %1129
        %v1131 = vsel %vm385, %v1126, %v1128
        %v1132 = vsel %vm385, %v1128, %v1130
        %v1135 = vmul.f32 %v1106, %v1131
        %v1136 = vmul.f32 %v1106, %v1132
        %v1137 = vadd.f32 %v1101, %v1135
        %v1138 = vadd.f32 %v1102, %v1136
        %v1139 = vld [vmem:[#allocation3 + $0x2] sm:$0xf]
        %1140 = vset.pattern.permute.xlu0 24
        %1141 = vperm.xlu0 %1140, %v266
        %v1142 = vpop.permute.xlu0 %1141
        %v1146 = vunpack.c.l.s4 1983009808
        %v1147 = vunpack.c.0.s8 %v1146
        %v1148 = vlaneseq
        %v1149 = vshrl.u32 %v1148, 7
        %v1150 = vsub.s32 %v1147, %v1149
        %v1151 = vrot.slane %v1139, %v1150
        %v1152 = vcombine.high %v1151, %v1151
        %v1155 = vmul.f32 %v1142, %v1151
        %v1156 = vmul.f32 %v1142, %v1152
        %v1157 = vadd.f32 %v1137, %v1155
        %v1158 = vadd.f32 %v1138, %v1156
        %v1159 = vld [vmem:[#allocation3 + $0x2] sm:$0x3f]
        %1160 = vset.pattern.permute.xlu0 31
        %1161 = vperm.xlu0 %1160, %v266
        %v1162 = vpop.permute.xlu0 %1161
        %v1165 = vcombine.high %v1159, %v1159
        %v1167 = vunpack.c.l.s4 1983009808
        %v1168 = vunpack.c.0.s8 %v1167
        %v1169 = vlaneseq
        %v1170 = vshrl.u32 %v1169, 7
        %v1171 = vsub.s32 %v1168, %v1170
        %v1172 = vrot.slane %v1159, %v1171
        %v1174 = vunpack.c.l.s4 1983009808
        %v1175 = vunpack.c.0.s8 %v1174
        %v1176 = vlaneseq
        %v1177 = vshrl.u32 %v1176, 7
        %v1178 = vsub.s32 %v1175, %v1177
        %v1179 = vrot.slane %v1165, %v1178
        %v1180 = vcombine.high %v1172, %v1172
        %1181 = vrot.lane.b32.xlu0 %v1172, 112
        %v1182 = vpop.permute.xlu0 %1181
        %1183 = vrot.lane.b32.xlu0 %v1180, 112
        %v1184 = vpop.permute.xlu0 %1183
        %1185 = vrot.lane.b32.xlu0 %v1179, 112
        %v1186 = vpop.permute.xlu0 %1185
        %v1187 = vsel %vm442, %v1182, %v1184
        %v1188 = vsel %vm442, %v1184, %v1186
        %v1191 = vmul.f32 %v1162, %v1187
        %v1192 = vmul.f32 %v1162, %v1188
        %v1193 = vadd.f32 %v1157, %v1191
        %v1194 = vadd.f32 %v1158, %v1192
        %v1195 = vld [vmem:[#allocation3 + $0x2] sm:$0x3f]
        %1196 = vset.pattern.permute.xlu0 38
        %1197 = vperm.xlu0 %1196, %v266
        %v1198 = vpop.permute.xlu0 %1197
        %v1201 = vcombine.high %v1195, %v1195
        %v1203 = vunpack.c.l.s4 1983009808
        %v1204 = vunpack.c.0.s8 %v1203
        %v1205 = vlaneseq
        %v1206 = vshrl.u32 %v1205, 7
        %v1207 = vsub.s32 %v1204, %v1206
        %v1208 = vrot.slane %v1195, %v1207
        %v1210 = vunpack.c.l.s4 1983009808
        %v1211 = vunpack.c.0.s8 %v1210
        %v1212 = vlaneseq
        %v1213 = vshrl.u32 %v1212, 7
        %v1214 = vsub.s32 %v1211, %v1213
        %v1215 = vrot.slane %v1201, %v1214
        %v1216 = vcombine.high %v1208, %v1208
        %1217 = vrot.lane.b32.xlu0 %v1208, 96
        %v1218 = vpop.permute.xlu0 %1217
        %1219 = vrot.lane.b32.xlu0 %v1216, 96
        %v1220 = vpop.permute.xlu0 %1219
        %1221 = vrot.lane.b32.xlu0 %v1215, 96
        %v1222 = vpop.permute.xlu0 %1221
        %v1223 = vsel %vm479, %v1218, %v1220
        %v1224 = vsel %vm479, %v1220, %v1222
        %v1227 = vmul.f32 %v1198, %v1223
        %v1228 = vmul.f32 %v1198, %v1224
        %v1229 = vadd.f32 %v1193, %v1227
        %v1230 = vadd.f32 %v1194, %v1228
        %v1231 = vld [vmem:[#allocation3 + $0x2] sm:$0x3f]
        %1232 = vset.pattern.permute.xlu0 45
        %1233 = vperm.xlu0 %1232, %v266
        %v1234 = vpop.permute.xlu0 %1233
        %v1237 = vcombine.high %v1231, %v1231
        %v1239 = vunpack.c.l.s4 1983009808
        %v1240 = vunpack.c.0.s8 %v1239
        %v1241 = vlaneseq
        %v1242 = vshrl.u32 %v1241, 7
        %v1243 = vsub.s32 %v1240, %v1242
        %v1244 = vrot.slane %v1231, %v1243
        %v1246 = vunpack.c.l.s4 1983009808
        %v1247 = vunpack.c.0.s8 %v1246
        %v1248 = vlaneseq
        %v1249 = vshrl.u32 %v1248, 7
        %v1250 = vsub.s32 %v1247, %v1249
        %v1251 = vrot.slane %v1237, %v1250
        %v1252 = vcombine.high %v1244, %v1244
        %1253 = vrot.lane.b32.xlu0 %v1244, 80
        %v1254 = vpop.permute.xlu0 %1253
        %1255 = vrot.lane.b32.xlu0 %v1252, 80
        %v1256 = vpop.permute.xlu0 %1255
        %1257 = vrot.lane.b32.xlu0 %v1251, 80
        %v1258 = vpop.permute.xlu0 %1257
        %v1259 = vsel %vm516, %v1254, %v1256
        %v1260 = vsel %vm516, %v1256, %v1258
        %v1263 = vmul.f32 %v1234, %v1259
        %v1264 = vmul.f32 %v1234, %v1260
        %v1265 = vadd.f32 %v1229, %v1263
        %v1266 = vadd.f32 %v1230, %v1264
        %v1267 = vadd.s32 %v267, 1
        %vm1268 = vcmp.ge.s32.totalorder %v1267, 0
        %vm1269 = vcmp.lt.s32.totalorder %v1267, 16
        %vm1270 = vmand %vm1268, %vm1269
        %v1271 = vld [vmem:[#allocation2 + $0x2] sm:$0x3f]
        %1273 = vrot.lane.b32.xlu0 %v1271, 127
        %v1274 = vpop.permute.xlu0 %1273
        %v1275 = vrot.slane %v1274, 2
        %vm1276 = vcmask 1039360
        %v1277 = vsel %vm1276, %v1274, %v1275
        %v1279 = vsel %vm1270, %v1277, 0.0
        %1280 = vst [vmem:[#allocation3 + $0x2] sm:$0xf] %v1279
        %v1281 = vld [vmem:[#allocation3] sm:$0x3f]
        %1282 = vset.pattern.permute.xlu0 4
        %1283 = vperm.xlu0 %1282, %v266
        %v1284 = vpop.permute.xlu0 %1283
        %v1287 = vcombine.high %v1281, %v1281
        %v1289 = vunpack.c.l.s4 1983009808
        %v1290 = vunpack.c.0.s8 %v1289
        %v1291 = vlaneseq
        %v1292 = vshrl.u32 %v1291, 7
        %v1293 = vsub.s32 %v1290, %v1292
        %v1294 = vrot.slane %v1281, %v1293
        %v1296 = vunpack.c.l.s4 1983009808
        %v1297 = vunpack.c.0.s8 %v1296
        %v1298 = vlaneseq
        %v1299 = vshrl.u32 %v1298, 7
        %v1300 = vsub.s32 %v1297, %v1299
        %v1301 = vrot.slane %v1287, %v1300
        %v1302 = vcombine.high %v1294, %v1294
        %1303 = vrot.lane.b32.xlu0 %v1294, 48
        %v1304 = vpop.permute.xlu0 %1303
        %1305 = vrot.lane.b32.xlu0 %v1302, 48
        %v1306 = vpop.permute.xlu0 %1305
        %1307 = vrot.lane.b32.xlu0 %v1301, 48
        %v1308 = vpop.permute.xlu0 %1307
        %v1309 = vsel %vm311, %v1304, %v1306
        %v1310 = vsel %vm311, %v1306, %v1308
        %v1313 = vmul.f32 %v1284, %v1309
        %v1314 = vmul.f32 %v1284, %v1310
        %v1315 = vadd.f32 %v1265, %v1313
        %v1316 = vadd.f32 %v1266, %v1314
        %v1317 = vld [vmem:[#allocation3] sm:$0x3f]
        %1318 = vset.pattern.permute.xlu0 11
        %1319 = vperm.xlu0 %1318, %v266
        %v1320 = vpop.permute.xlu0 %1319
        %v1323 = vcombine.high %v1317, %v1317
        %v1325 = vunpack.c.l.s4 1983009808
        %v1326 = vunpack.c.0.s8 %v1325
        %v1327 = vlaneseq
        %v1328 = vshrl.u32 %v1327, 7
        %v1329 = vsub.s32 %v1326, %v1328
        %v1330 = vrot.slane %v1317, %v1329
        %v1332 = vunpack.c.l.s4 1983009808
        %v1333 = vunpack.c.0.s8 %v1332
        %v1334 = vlaneseq
        %v1335 = vshrl.u32 %v1334, 7
        %v1336 = vsub.s32 %v1333, %v1335
        %v1337 = vrot.slane %v1323, %v1336
        %v1338 = vcombine.high %v1330, %v1330
        %1339 = vrot.lane.b32.xlu0 %v1330, 32
        %v1340 = vpop.permute.xlu0 %1339
        %1341 = vrot.lane.b32.xlu0 %v1338, 32
        %v1342 = vpop.permute.xlu0 %1341
        %1343 = vrot.lane.b32.xlu0 %v1337, 32
        %v1344 = vpop.permute.xlu0 %1343
        %v1345 = vsel %vm348, %v1340, %v1342
        %v1346 = vsel %vm348, %v1342, %v1344
        %v1349 = vmul.f32 %v1320, %v1345
        %v1350 = vmul.f32 %v1320, %v1346
        %v1351 = vadd.f32 %v1315, %v1349
        %v1352 = vadd.f32 %v1316, %v1350
        %v1353 = vld [vmem:[#allocation3] sm:$0x3f]
        %1354 = vset.pattern.permute.xlu0 18
        %1355 = vperm.xlu0 %1354, %v266
        %v1356 = vpop.permute.xlu0 %1355
        %v1359 = vcombine.high %v1353, %v1353
        %v1361 = vunpack.c.l.s4 1983009808
        %v1362 = vunpack.c.0.s8 %v1361
        %v1363 = vlaneseq
        %v1364 = vshrl.u32 %v1363, 7
        %v1365 = vsub.s32 %v1362, %v1364
        %v1366 = vrot.slane %v1353, %v1365
        %v1368 = vunpack.c.l.s4 1983009808
        %v1369 = vunpack.c.0.s8 %v1368
        %v1370 = vlaneseq
        %v1371 = vshrl.u32 %v1370, 7
        %v1372 = vsub.s32 %v1369, %v1371
        %v1373 = vrot.slane %v1359, %v1372
        %v1374 = vcombine.high %v1366, %v1366
        %1375 = vrot.lane.b32.xlu0 %v1366, 16
        %v1376 = vpop.permute.xlu0 %1375
        %1377 = vrot.lane.b32.xlu0 %v1374, 16
        %v1378 = vpop.permute.xlu0 %1377
        %1379 = vrot.lane.b32.xlu0 %v1373, 16
        %v1380 = vpop.permute.xlu0 %1379
        %v1381 = vsel %vm385, %v1376, %v1378
        %v1382 = vsel %vm385, %v1378, %v1380
        %v1385 = vmul.f32 %v1356, %v1381
        %v1386 = vmul.f32 %v1356, %v1382
        %v1387 = vadd.f32 %v1351, %v1385
        %v1388 = vadd.f32 %v1352, %v1386
        %v1389 = vld [vmem:[#allocation3 + $0x2] sm:$0xf]
        %1390 = vset.pattern.permute.xlu0 25
        %1391 = vperm.xlu0 %1390, %v266
        %v1392 = vpop.permute.xlu0 %1391
        %v1396 = vunpack.c.l.s4 1983009808
        %v1397 = vunpack.c.0.s8 %v1396
        %v1398 = vlaneseq
        %v1399 = vshrl.u32 %v1398, 7
        %v1400 = vsub.s32 %v1397, %v1399
        %v1401 = vrot.slane %v1389, %v1400
        %v1402 = vcombine.high %v1401, %v1401
        %v1405 = vmul.f32 %v1392, %v1401
        %v1406 = vmul.f32 %v1392, %v1402
        %v1407 = vadd.f32 %v1387, %v1405
        %v1408 = vadd.f32 %v1388, %v1406
        %v1409 = vld [vmem:[#allocation3 + $0x2] sm:$0x3f]
        %1410 = vset.pattern.permute.xlu0 32
        %1411 = vperm.xlu0 %1410, %v266
        %v1412 = vpop.permute.xlu0 %1411
        %v1415 = vcombine.high %v1409, %v1409
        %v1417 = vunpack.c.l.s4 1983009808
        %v1418 = vunpack.c.0.s8 %v1417
        %v1419 = vlaneseq
        %v1420 = vshrl.u32 %v1419, 7
        %v1421 = vsub.s32 %v1418, %v1420
        %v1422 = vrot.slane %v1409, %v1421
        %v1424 = vunpack.c.l.s4 1983009808
        %v1425 = vunpack.c.0.s8 %v1424
        %v1426 = vlaneseq
        %v1427 = vshrl.u32 %v1426, 7
        %v1428 = vsub.s32 %v1425, %v1427
        %v1429 = vrot.slane %v1415, %v1428
        %v1430 = vcombine.high %v1422, %v1422
        %1431 = vrot.lane.b32.xlu0 %v1422, 112
        %v1432 = vpop.permute.xlu0 %1431
        %1433 = vrot.lane.b32.xlu0 %v1430, 112
        %v1434 = vpop.permute.xlu0 %1433
        %1435 = vrot.lane.b32.xlu0 %v1429, 112
        %v1436 = vpop.permute.xlu0 %1435
        %v1437 = vsel %vm442, %v1432, %v1434
        %v1438 = vsel %vm442, %v1434, %v1436
        %v1441 = vmul.f32 %v1412, %v1437
        %v1442 = vmul.f32 %v1412, %v1438
        %v1443 = vadd.f32 %v1407, %v1441
        %v1444 = vadd.f32 %v1408, %v1442
        %v1445 = vld [vmem:[#allocation3 + $0x2] sm:$0x3f]
        %1446 = vset.pattern.permute.xlu0 39
        %1447 = vperm.xlu0 %1446, %v266
        %v1448 = vpop.permute.xlu0 %1447
        %v1451 = vcombine.high %v1445, %v1445
        %v1453 = vunpack.c.l.s4 1983009808
        %v1454 = vunpack.c.0.s8 %v1453
        %v1455 = vlaneseq
        %v1456 = vshrl.u32 %v1455, 7
        %v1457 = vsub.s32 %v1454, %v1456
        %v1458 = vrot.slane %v1445, %v1457
        %v1460 = vunpack.c.l.s4 1983009808
        %v1461 = vunpack.c.0.s8 %v1460
        %v1462 = vlaneseq
        %v1463 = vshrl.u32 %v1462, 7
        %v1464 = vsub.s32 %v1461, %v1463
        %v1465 = vrot.slane %v1451, %v1464
        %v1466 = vcombine.high %v1458, %v1458
        %1467 = vrot.lane.b32.xlu0 %v1458, 96
        %v1468 = vpop.permute.xlu0 %1467
        %1469 = vrot.lane.b32.xlu0 %v1466, 96
        %v1470 = vpop.permute.xlu0 %1469
        %1471 = vrot.lane.b32.xlu0 %v1465, 96
        %v1472 = vpop.permute.xlu0 %1471
        %v1473 = vsel %vm479, %v1468, %v1470
        %v1474 = vsel %vm479, %v1470, %v1472
        %v1477 = vmul.f32 %v1448, %v1473
        %v1478 = vmul.f32 %v1448, %v1474
        %v1479 = vadd.f32 %v1443, %v1477
        %v1480 = vadd.f32 %v1444, %v1478
        %v1481 = vld [vmem:[#allocation3 + $0x2] sm:$0x3f]
        %1482 = vset.pattern.permute.xlu0 46
        %1483 = vperm.xlu0 %1482, %v266
        %v1484 = vpop.permute.xlu0 %1483
        %v1487 = vcombine.high %v1481, %v1481
        %v1489 = vunpack.c.l.s4 1983009808
        %v1490 = vunpack.c.0.s8 %v1489
        %v1491 = vlaneseq
        %v1492 = vshrl.u32 %v1491, 7
        %v1493 = vsub.s32 %v1490, %v1492
        %v1494 = vrot.slane %v1481, %v1493
        %v1496 = vunpack.c.l.s4 1983009808
        %v1497 = vunpack.c.0.s8 %v1496
        %v1498 = vlaneseq
        %v1499 = vshrl.u32 %v1498, 7
        %v1500 = vsub.s32 %v1497, %v1499
        %v1501 = vrot.slane %v1487, %v1500
        %v1502 = vcombine.high %v1494, %v1494
        %1503 = vrot.lane.b32.xlu0 %v1494, 80
        %v1504 = vpop.permute.xlu0 %1503
        %1505 = vrot.lane.b32.xlu0 %v1502, 80
        %v1506 = vpop.permute.xlu0 %1505
        %1507 = vrot.lane.b32.xlu0 %v1501, 80
        %v1508 = vpop.permute.xlu0 %1507
        %v1509 = vsel %vm516, %v1504, %v1506
        %v1510 = vsel %vm516, %v1506, %v1508
        %v1513 = vmul.f32 %v1484, %v1509
        %v1514 = vmul.f32 %v1484, %v1510
        %v1515 = vadd.f32 %v1479, %v1513
        %v1516 = vadd.f32 %v1480, %v1514
        %v1517 = vadd.s32 %v267, 2
        %vm1518 = vcmp.ge.s32.totalorder %v1517, 0
        %vm1519 = vcmp.lt.s32.totalorder %v1517, 16
        %vm1520 = vmand %vm1518, %vm1519
        %v1521 = vld [vmem:[#allocation2 + $0x2] sm:$0x3f]
        %1523 = vrot.lane.b32.xlu0 %v1521, 126
        %v1524 = vpop.permute.xlu0 %1523
        %v1525 = vrot.slane %v1524, 2
        %vm1526 = vcmask 1031168
        %v1527 = vsel %vm1526, %v1524, %v1525
        %v1529 = vsel %vm1520, %v1527, 0.0
        %1530 = vst [vmem:[#allocation3 + $0x2] sm:$0xf] %v1529
        %v1531 = vld [vmem:[#allocation3] sm:$0x3f]
        %1532 = vset.pattern.permute.xlu0 5
        %1533 = vperm.xlu0 %1532, %v266
        %v1534 = vpop.permute.xlu0 %1533
        %v1537 = vcombine.high %v1531, %v1531
        %v1539 = vunpack.c.l.s4 1983009808
        %v1540 = vunpack.c.0.s8 %v1539
        %v1541 = vlaneseq
        %v1542 = vshrl.u32 %v1541, 7
        %v1543 = vsub.s32 %v1540, %v1542
        %v1544 = vrot.slane %v1531, %v1543
        %v1546 = vunpack.c.l.s4 1983009808
        %v1547 = vunpack.c.0.s8 %v1546
        %v1548 = vlaneseq
        %v1549 = vshrl.u32 %v1548, 7
        %v1550 = vsub.s32 %v1547, %v1549
        %v1551 = vrot.slane %v1537, %v1550
        %v1552 = vcombine.high %v1544, %v1544
        %1553 = vrot.lane.b32.xlu0 %v1544, 48
        %v1554 = vpop.permute.xlu0 %1553
        %1555 = vrot.lane.b32.xlu0 %v1552, 48
        %v1556 = vpop.permute.xlu0 %1555
        %1557 = vrot.lane.b32.xlu0 %v1551, 48
        %v1558 = vpop.permute.xlu0 %1557
        %v1559 = vsel %vm311, %v1554, %v1556
        %v1560 = vsel %vm311, %v1556, %v1558
        %v1563 = vmul.f32 %v1534, %v1559
        %v1564 = vmul.f32 %v1534, %v1560
        %v1565 = vadd.f32 %v1515, %v1563
        %v1566 = vadd.f32 %v1516, %v1564
        %v1567 = vld [vmem:[#allocation3] sm:$0x3f]
        %1568 = vset.pattern.permute.xlu0 12
        %1569 = vperm.xlu0 %1568, %v266
        %v1570 = vpop.permute.xlu0 %1569
        %v1573 = vcombine.high %v1567, %v1567
        %v1575 = vunpack.c.l.s4 1983009808
        %v1576 = vunpack.c.0.s8 %v1575
        %v1577 = vlaneseq
        %v1578 = vshrl.u32 %v1577, 7
        %v1579 = vsub.s32 %v1576, %v1578
        %v1580 = vrot.slane %v1567, %v1579
        %v1582 = vunpack.c.l.s4 1983009808
        %v1583 = vunpack.c.0.s8 %v1582
        %v1584 = vlaneseq
        %v1585 = vshrl.u32 %v1584, 7
        %v1586 = vsub.s32 %v1583, %v1585
        %v1587 = vrot.slane %v1573, %v1586
        %v1588 = vcombine.high %v1580, %v1580
        %1589 = vrot.lane.b32.xlu0 %v1580, 32
        %v1590 = vpop.permute.xlu0 %1589
        %1591 = vrot.lane.b32.xlu0 %v1588, 32
        %v1592 = vpop.permute.xlu0 %1591
        %1593 = vrot.lane.b32.xlu0 %v1587, 32
        %v1594 = vpop.permute.xlu0 %1593
        %v1595 = vsel %vm348, %v1590, %v1592
        %v1596 = vsel %vm348, %v1592, %v1594
        %v1599 = vmul.f32 %v1570, %v1595
        %v1600 = vmul.f32 %v1570, %v1596
        %v1601 = vadd.f32 %v1565, %v1599
        %v1602 = vadd.f32 %v1566, %v1600
        %v1603 = vld [vmem:[#allocation3] sm:$0x3f]
        %1604 = vset.pattern.permute.xlu0 19
        %1605 = vperm.xlu0 %1604, %v266
        %v1606 = vpop.permute.xlu0 %1605
        %v1609 = vcombine.high %v1603, %v1603
        %v1611 = vunpack.c.l.s4 1983009808
        %v1612 = vunpack.c.0.s8 %v1611
        %v1613 = vlaneseq
        %v1614 = vshrl.u32 %v1613, 7
        %v1615 = vsub.s32 %v1612, %v1614
        %v1616 = vrot.slane %v1603, %v1615
        %v1618 = vunpack.c.l.s4 1983009808
        %v1619 = vunpack.c.0.s8 %v1618
        %v1620 = vlaneseq
        %v1621 = vshrl.u32 %v1620, 7
        %v1622 = vsub.s32 %v1619, %v1621
        %v1623 = vrot.slane %v1609, %v1622
        %v1624 = vcombine.high %v1616, %v1616
        %1625 = vrot.lane.b32.xlu0 %v1616, 16
        %v1626 = vpop.permute.xlu0 %1625
        %1627 = vrot.lane.b32.xlu0 %v1624, 16
        %v1628 = vpop.permute.xlu0 %1627
        %1629 = vrot.lane.b32.xlu0 %v1623, 16
        %v1630 = vpop.permute.xlu0 %1629
        %v1631 = vsel %vm385, %v1626, %v1628
        %v1632 = vsel %vm385, %v1628, %v1630
        %v1635 = vmul.f32 %v1606, %v1631
        %v1636 = vmul.f32 %v1606, %v1632
        %v1637 = vadd.f32 %v1601, %v1635
        %v1638 = vadd.f32 %v1602, %v1636
        %v1639 = vld [vmem:[#allocation3 + $0x2] sm:$0xf]
        %1640 = vset.pattern.permute.xlu0 26
        %1641 = vperm.xlu0 %1640, %v266
        %v1642 = vpop.permute.xlu0 %1641
        %v1646 = vunpack.c.l.s4 1983009808
        %v1647 = vunpack.c.0.s8 %v1646
        %v1648 = vlaneseq
        %v1649 = vshrl.u32 %v1648, 7
        %v1650 = vsub.s32 %v1647, %v1649
        %v1651 = vrot.slane %v1639, %v1650
        %v1652 = vcombine.high %v1651, %v1651
        %v1655 = vmul.f32 %v1642, %v1651
        %v1656 = vmul.f32 %v1642, %v1652
        %v1657 = vadd.f32 %v1637, %v1655
        %v1658 = vadd.f32 %v1638, %v1656
        %v1659 = vld [vmem:[#allocation3 + $0x2] sm:$0x3f]
        %1660 = vset.pattern.permute.xlu0 33
        %1661 = vperm.xlu0 %1660, %v266
        %v1662 = vpop.permute.xlu0 %1661
        %v1665 = vcombine.high %v1659, %v1659
        %v1667 = vunpack.c.l.s4 1983009808
        %v1668 = vunpack.c.0.s8 %v1667
        %v1669 = vlaneseq
        %v1670 = vshrl.u32 %v1669, 7
        %v1671 = vsub.s32 %v1668, %v1670
        %v1672 = vrot.slane %v1659, %v1671
        %v1674 = vunpack.c.l.s4 1983009808
        %v1675 = vunpack.c.0.s8 %v1674
        %v1676 = vlaneseq
        %v1677 = vshrl.u32 %v1676, 7
        %v1678 = vsub.s32 %v1675, %v1677
        %v1679 = vrot.slane %v1665, %v1678
        %v1680 = vcombine.high %v1672, %v1672
        %1681 = vrot.lane.b32.xlu0 %v1672, 112
        %v1682 = vpop.permute.xlu0 %1681
        %1683 = vrot.lane.b32.xlu0 %v1680, 112
        %v1684 = vpop.permute.xlu0 %1683
        %1685 = vrot.lane.b32.xlu0 %v1679, 112
        %v1686 = vpop.permute.xlu0 %1685
        %v1687 = vsel %vm442, %v1682, %v1684
        %v1688 = vsel %vm442, %v1684, %v1686
        %v1691 = vmul.f32 %v1662, %v1687
        %v1692 = vmul.f32 %v1662, %v1688
        %v1693 = vadd.f32 %v1657, %v1691
        %v1694 = vadd.f32 %v1658, %v1692
        %v1695 = vld [vmem:[#allocation3 + $0x2] sm:$0x3f]
        %1696 = vset.pattern.permute.xlu0 40
        %1697 = vperm.xlu0 %1696, %v266
        %v1698 = vpop.permute.xlu0 %1697
        %v1701 = vcombine.high %v1695, %v1695
        %v1703 = vunpack.c.l.s4 1983009808
        %v1704 = vunpack.c.0.s8 %v1703
        %v1705 = vlaneseq
        %v1706 = vshrl.u32 %v1705, 7
        %v1707 = vsub.s32 %v1704, %v1706
        %v1708 = vrot.slane %v1695, %v1707
        %v1710 = vunpack.c.l.s4 1983009808
        %v1711 = vunpack.c.0.s8 %v1710
        %v1712 = vlaneseq
        %v1713 = vshrl.u32 %v1712, 7
        %v1714 = vsub.s32 %v1711, %v1713
        %v1715 = vrot.slane %v1701, %v1714
        %v1716 = vcombine.high %v1708, %v1708
        %1717 = vrot.lane.b32.xlu0 %v1708, 96
        %v1718 = vpop.permute.xlu0 %1717
        %1719 = vrot.lane.b32.xlu0 %v1716, 96
        %v1720 = vpop.permute.xlu0 %1719
        %1721 = vrot.lane.b32.xlu0 %v1715, 96
        %v1722 = vpop.permute.xlu0 %1721
        %v1723 = vsel %vm479, %v1718, %v1720
        %v1724 = vsel %vm479, %v1720, %v1722
        %v1727 = vmul.f32 %v1698, %v1723
        %v1728 = vmul.f32 %v1698, %v1724
        %v1729 = vadd.f32 %v1693, %v1727
        %v1730 = vadd.f32 %v1694, %v1728
        %v1731 = vld [vmem:[#allocation3 + $0x2] sm:$0x3f]
        %1732 = vset.pattern.permute.xlu0 47
        %1733 = vperm.xlu0 %1732, %v266
        %v1734 = vpop.permute.xlu0 %1733
        %v1737 = vcombine.high %v1731, %v1731
        %v1739 = vunpack.c.l.s4 1983009808
        %v1740 = vunpack.c.0.s8 %v1739
        %v1741 = vlaneseq
        %v1742 = vshrl.u32 %v1741, 7
        %v1743 = vsub.s32 %v1740, %v1742
        %v1744 = vrot.slane %v1731, %v1743
        %v1746 = vunpack.c.l.s4 1983009808
        %v1747 = vunpack.c.0.s8 %v1746
        %v1748 = vlaneseq
        %v1749 = vshrl.u32 %v1748, 7
        %v1750 = vsub.s32 %v1747, %v1749
        %v1751 = vrot.slane %v1737, %v1750
        %v1752 = vcombine.high %v1744, %v1744
        %1753 = vrot.lane.b32.xlu0 %v1744, 80
        %v1754 = vpop.permute.xlu0 %1753
        %1755 = vrot.lane.b32.xlu0 %v1752, 80
        %v1756 = vpop.permute.xlu0 %1755
        %1757 = vrot.lane.b32.xlu0 %v1751, 80
        %v1758 = vpop.permute.xlu0 %1757
        %v1759 = vsel %vm516, %v1754, %v1756
        %v1760 = vsel %vm516, %v1756, %v1758
        %v1763 = vmul.f32 %v1734, %v1759
        %v1764 = vmul.f32 %v1734, %v1760
        %v1765 = vadd.f32 %v1729, %v1763
        %v1766 = vadd.f32 %v1730, %v1764
        %v1767 = vadd.s32 %v267, 3
        %vm1768 = vcmp.ge.s32.totalorder %v1767, 0
        %vm1769 = vcmp.lt.s32.totalorder %v1767, 16
        %vm1770 = vmand %vm1768, %vm1769
        %v1771 = vld [vmem:[#allocation2 + $0x2] sm:$0x3f]
        %1773 = vrot.lane.b32.xlu0 %v1771, 125
        %v1774 = vpop.permute.xlu0 %1773
        %v1775 = vrot.slane %v1774, 2
        %vm1776 = vcmask 1022976
        %v1777 = vsel %vm1776, %v1774, %v1775
        %v1779 = vsel %vm1770, %v1777, 0.0
        %1780 = vst [vmem:[#allocation3 + $0x2] sm:$0xf] %v1779
        %v1781 = vld [vmem:[#allocation3] sm:$0x3f]
        %1782 = vset.pattern.permute.xlu0 6
        %1783 = vperm.xlu0 %1782, %v266
        %v1784 = vpop.permute.xlu0 %1783
        %v1787 = vcombine.high %v1781, %v1781
        %v1789 = vunpack.c.l.s4 1983009808
        %v1790 = vunpack.c.0.s8 %v1789
        %v1791 = vlaneseq
        %v1792 = vshrl.u32 %v1791, 7
        %v1793 = vsub.s32 %v1790, %v1792
        %v1794 = vrot.slane %v1781, %v1793
        %v1796 = vunpack.c.l.s4 1983009808
        %v1797 = vunpack.c.0.s8 %v1796
        %v1798 = vlaneseq
        %v1799 = vshrl.u32 %v1798, 7
        %v1800 = vsub.s32 %v1797, %v1799
        %v1801 = vrot.slane %v1787, %v1800
        %v1802 = vcombine.high %v1794, %v1794
        %1803 = vrot.lane.b32.xlu0 %v1794, 48
        %v1804 = vpop.permute.xlu0 %1803
        %1805 = vrot.lane.b32.xlu0 %v1802, 48
        %v1806 = vpop.permute.xlu0 %1805
        %1807 = vrot.lane.b32.xlu0 %v1801, 48
        %v1808 = vpop.permute.xlu0 %1807
        %v1809 = vsel %vm311, %v1804, %v1806
        %v1810 = vsel %vm311, %v1806, %v1808
        %v1813 = vmul.f32 %v1784, %v1809
        %v1814 = vmul.f32 %v1784, %v1810
        %v1815 = vadd.f32 %v1765, %v1813
        %v1816 = vadd.f32 %v1766, %v1814
        %v1817 = vld [vmem:[#allocation3] sm:$0x3f]
        %1818 = vset.pattern.permute.xlu0 13
        %1819 = vperm.xlu0 %1818, %v266
        %v1820 = vpop.permute.xlu0 %1819
        %v1823 = vcombine.high %v1817, %v1817
        %v1825 = vunpack.c.l.s4 1983009808
        %v1826 = vunpack.c.0.s8 %v1825
        %v1827 = vlaneseq
        %v1828 = vshrl.u32 %v1827, 7
        %v1829 = vsub.s32 %v1826, %v1828
        %v1830 = vrot.slane %v1817, %v1829
        %v1832 = vunpack.c.l.s4 1983009808
        %v1833 = vunpack.c.0.s8 %v1832
        %v1834 = vlaneseq
        %v1835 = vshrl.u32 %v1834, 7
        %v1836 = vsub.s32 %v1833, %v1835
        %v1837 = vrot.slane %v1823, %v1836
        %v1838 = vcombine.high %v1830, %v1830
        %1839 = vrot.lane.b32.xlu0 %v1830, 32
        %v1840 = vpop.permute.xlu0 %1839
        %1841 = vrot.lane.b32.xlu0 %v1838, 32
        %v1842 = vpop.permute.xlu0 %1841
        %1843 = vrot.lane.b32.xlu0 %v1837, 32
        %v1844 = vpop.permute.xlu0 %1843
        %v1845 = vsel %vm348, %v1840, %v1842
        %v1846 = vsel %vm348, %v1842, %v1844
        %v1849 = vmul.f32 %v1820, %v1845
        %v1850 = vmul.f32 %v1820, %v1846
        %v1851 = vadd.f32 %v1815, %v1849
        %v1852 = vadd.f32 %v1816, %v1850
        %v1853 = vld [vmem:[#allocation3] sm:$0x3f]
        %1854 = vset.pattern.permute.xlu0 20
        %1855 = vperm.xlu0 %1854, %v266
        %v1856 = vpop.permute.xlu0 %1855
        %v1859 = vcombine.high %v1853, %v1853
        %v1861 = vunpack.c.l.s4 1983009808
        %v1862 = vunpack.c.0.s8 %v1861
        %v1863 = vlaneseq
        %v1864 = vshrl.u32 %v1863, 7
        %v1865 = vsub.s32 %v1862, %v1864
        %v1866 = vrot.slane %v1853, %v1865
        %v1868 = vunpack.c.l.s4 1983009808
        %v1869 = vunpack.c.0.s8 %v1868
        %v1870 = vlaneseq
        %v1871 = vshrl.u32 %v1870, 7
        %v1872 = vsub.s32 %v1869, %v1871
        %v1873 = vrot.slane %v1859, %v1872
        %v1874 = vcombine.high %v1866, %v1866
        %1875 = vrot.lane.b32.xlu0 %v1866, 16
        %v1876 = vpop.permute.xlu0 %1875
        %1877 = vrot.lane.b32.xlu0 %v1874, 16
        %v1878 = vpop.permute.xlu0 %1877
        %1879 = vrot.lane.b32.xlu0 %v1873, 16
        %v1880 = vpop.permute.xlu0 %1879
        %v1881 = vsel %vm385, %v1876, %v1878
        %v1882 = vsel %vm385, %v1878, %v1880
        %v1885 = vmul.f32 %v1856, %v1881
        %v1886 = vmul.f32 %v1856, %v1882
        %v1887 = vadd.f32 %v1851, %v1885
        %v1888 = vadd.f32 %v1852, %v1886
        %v1889 = vld [vmem:[#allocation3 + $0x2] sm:$0xf]
        %1890 = vset.pattern.permute.xlu0 27
        %1891 = vperm.xlu0 %1890, %v266
        %v1892 = vpop.permute.xlu0 %1891
        %v1896 = vunpack.c.l.s4 1983009808
        %v1897 = vunpack.c.0.s8 %v1896
        %v1898 = vlaneseq
        %v1899 = vshrl.u32 %v1898, 7
        %v1900 = vsub.s32 %v1897, %v1899
        %v1901 = vrot.slane %v1889, %v1900
        %v1902 = vcombine.high %v1901, %v1901
        %v1905 = vmul.f32 %v1892, %v1901
        %v1906 = vmul.f32 %v1892, %v1902
        %v1907 = vadd.f32 %v1887, %v1905
        %v1908 = vadd.f32 %v1888, %v1906
        %v1909 = vld [vmem:[#allocation3 + $0x2] sm:$0x3f]
        %1910 = vset.pattern.permute.xlu0 34
        %1911 = vperm.xlu0 %1910, %v266
        %v1912 = vpop.permute.xlu0 %1911
        %v1915 = vcombine.high %v1909, %v1909
        %v1917 = vunpack.c.l.s4 1983009808
        %v1918 = vunpack.c.0.s8 %v1917
        %v1919 = vlaneseq
        %v1920 = vshrl.u32 %v1919, 7
        %v1921 = vsub.s32 %v1918, %v1920
        %v1922 = vrot.slane %v1909, %v1921
        %v1924 = vunpack.c.l.s4 1983009808
        %v1925 = vunpack.c.0.s8 %v1924
        %v1926 = vlaneseq
        %v1927 = vshrl.u32 %v1926, 7
        %v1928 = vsub.s32 %v1925, %v1927
        %v1929 = vrot.slane %v1915, %v1928
        %v1930 = vcombine.high %v1922, %v1922
        %1931 = vrot.lane.b32.xlu0 %v1922, 112
        %v1932 = vpop.permute.xlu0 %1931
        %1933 = vrot.lane.b32.xlu0 %v1930, 112
        %v1934 = vpop.permute.xlu0 %1933
        %1935 = vrot.lane.b32.xlu0 %v1929, 112
        %v1936 = vpop.permute.xlu0 %1935
        %v1937 = vsel %vm442, %v1932, %v1934
        %v1938 = vsel %vm442, %v1934, %v1936
        %v1941 = vmul.f32 %v1912, %v1937
        %v1942 = vmul.f32 %v1912, %v1938
        %v1943 = vadd.f32 %v1907, %v1941
        %v1944 = vadd.f32 %v1908, %v1942
        %v1945 = vld [vmem:[#allocation3 + $0x2] sm:$0x3f]
        %1946 = vset.pattern.permute.xlu0 41
        %1947 = vperm.xlu0 %1946, %v266
        %v1948 = vpop.permute.xlu0 %1947
        %v1951 = vcombine.high %v1945, %v1945
        %v1953 = vunpack.c.l.s4 1983009808
        %v1954 = vunpack.c.0.s8 %v1953
        %v1955 = vlaneseq
        %v1956 = vshrl.u32 %v1955, 7
        %v1957 = vsub.s32 %v1954, %v1956
        %v1958 = vrot.slane %v1945, %v1957
        %v1960 = vunpack.c.l.s4 1983009808
        %v1961 = vunpack.c.0.s8 %v1960
        %v1962 = vlaneseq
        %v1963 = vshrl.u32 %v1962, 7
        %v1964 = vsub.s32 %v1961, %v1963
        %v1965 = vrot.slane %v1951, %v1964
        %v1966 = vcombine.high %v1958, %v1958
        %1967 = vrot.lane.b32.xlu0 %v1958, 96
        %v1968 = vpop.permute.xlu0 %1967
        %1969 = vrot.lane.b32.xlu0 %v1966, 96
        %v1970 = vpop.permute.xlu0 %1969
        %1971 = vrot.lane.b32.xlu0 %v1965, 96
        %v1972 = vpop.permute.xlu0 %1971
        %v1973 = vsel %vm479, %v1968, %v1970
        %v1974 = vsel %vm479, %v1970, %v1972
        %v1977 = vmul.f32 %v1948, %v1973
        %v1978 = vmul.f32 %v1948, %v1974
        %v1979 = vadd.f32 %v1943, %v1977
        %v1980 = vadd.f32 %v1944, %v1978
        %v1981 = vld [vmem:[#allocation3 + $0x2] sm:$0x3f]
        %1982 = vset.pattern.permute.xlu0 48
        %1983 = vperm.xlu0 %1982, %v266
        %v1984 = vpop.permute.xlu0 %1983
        %v1987 = vcombine.high %v1981, %v1981
        %v1989 = vunpack.c.l.s4 1983009808
        %v1990 = vunpack.c.0.s8 %v1989
        %v1991 = vlaneseq
        %v1992 = vshrl.u32 %v1991, 7
        %v1993 = vsub.s32 %v1990, %v1992
        %v1994 = vrot.slane %v1981, %v1993
        %v1996 = vunpack.c.l.s4 1983009808
        %v1997 = vunpack.c.0.s8 %v1996
        %v1998 = vlaneseq
        %v1999 = vshrl.u32 %v1998, 7
        %v2000 = vsub.s32 %v1997, %v1999
        %v2001 = vrot.slane %v1987, %v2000
        %v2002 = vcombine.high %v1994, %v1994
        %2003 = vrot.lane.b32.xlu0 %v1994, 80
        %v2004 = vpop.permute.xlu0 %2003
        %2005 = vrot.lane.b32.xlu0 %v2002, 80
        %v2006 = vpop.permute.xlu0 %2005
        %2007 = vrot.lane.b32.xlu0 %v2001, 80
        %v2008 = vpop.permute.xlu0 %2007
        %v2009 = vsel %vm516, %v2004, %v2006
        %v2010 = vsel %vm516, %v2006, %v2008
        %v2013 = vmul.f32 %v1984, %v2009
        %v2014 = vmul.f32 %v1984, %v2010
        %v2015 = vadd.f32 %v1979, %v2013
        %v2016 = vadd.f32 %v1980, %v2014
        %v2019 = vrot.slane %v2015, 1
        %v2020 = vrot.slane %v2016, 1
        %v2023 = vadd.f32 %v2015, %v2019
        %v2024 = vadd.f32 %v2016, %v2020
        %s2025 = sld [smem:[#allocation4]]
        %v2026 = vstv %s2025
        %v2027 = vmul.f32 %v2023, %v2026
        %v2028 = vmul.f32 %v2024, %v2026
        %s2029 = sld [smem:[#allocation4 + $0x1]]
        %v2030 = vstv %s2029
        %v2031 = vadd.f32 %v2027, %v2030
        %v2032 = vadd.f32 %v2028, %v2030
        %v2033 = vxor.u32 %v2031, 2147483648
        %v2034 = vxor.u32 %v2032, 2147483648
        %v2035 = vmul.f32 %v2033, 1.442695
        %v2036 = vpow.pop %v2035
        %v2037 = vmul.f32 %v2034, 1.442695
        %v2038 = vpow.pop %v2037
        %v2039 = vadd.f32 %v2036, 1.0
        %v2040 = vadd.f32 %v2038, 1.0
        %v2041 = vrcp.pop %v2039
        %v2042 = vmul.f32 1.0, %v2041
        %v2043 = vrcp.pop %v2040
        %v2044 = vmul.f32 1.0, %v2043
        %v2045 = vld [vmem:[%s206] sm:$0xff]
        %v2046 = vlaneseq
        %v2047 = vshrl.u32 %v2046, 7
        %v2048 = vsub.s32 0, %v2047
        %v2049 = vrot.slane %v2042, %v2048
        %v2050 = vlaneseq
        %v2051 = vshrl.u32 %v2050, 7
        %v2052 = vsub.s32 0, %v2051
        %v2053 = vrot.slane %v2044, %v2052
        %v2056 = vcombine.low %v2049, %v2053
        %v2058 = vmul.f32 %v2045, %v2056
        %2059 = vst [vmem:[%s211] sm:$0xff] %v2058
        %p2060 = scmp.lt.s32.totalorder %s16, 1
        %s2061 = scalar_select %p2060, %s16, 1
        %s2062 = smul.addr %s2061, 2
        %s2063 = smul.addr %s2062, 4
        %s2064 = scalar_lea.vmem %s4, %s2063
        // Predicated region
        $region41: #{spatial_attention.1} parent=35 // pred_check
          %p2065 = pneg %p123
        $region42: #{spatial_attention.1} parent=35 // pred_check_branch
          %2067 = sbr.rel (%p2065) target = $region44
        $region43: #{spatial_attention.1} parent=35 // pred_region
          _
        $region44: #{spatial_attention.1} parent=35 // pred_fallthru
          _
      $region36: #{spatial_attention.1} parent=5 // pred_fallthru
        _
      %p2068 = scmp.le.s32.totalorder 2, %s11
      // Predicated region
      $region45: #{spatial_attention.1} parent=5 // pred_check
        %p2069 = pneg %p2068
      $region46: #{spatial_attention.1} parent=5 // pred_check_branch
        %2071 = sbr.rel (%p2069) target = $region48
      $region47: #{spatial_attention.1} parent=5 // pred_region
        %s2072 = ssub.s32 %s11, 2
        // Predicated region
        $region49: #{spatial_attention.1} parent=47 // pred_check
          %p2073 = pneg %p129
        $region50: #{spatial_attention.1} parent=47 // pred_check_branch
          %2075 = sbr.rel (%p2073) target = $region52
        $region51: #{spatial_attention.1} parent=47 // pred_region
          %p2076 = scmp.lt.s32.totalorder %s17, 1
          %s2077 = scalar_select %p2076, %s17, 1
          %s2078 = smul.addr %s2077, 2
          %s2079 = smul.addr %s2078, 4
          %s2080 = scalar_lea.vmem %s4, %s2079
        $region52: #{spatial_attention.1} parent=47 // pred_fallthru
          _
      $region48: #{spatial_attention.1} parent=5 // pred_fallthru
        _
    $region6: #{spatial_attention.1} parent=1 // loop_footer
      %s15 = sadd.s32 1, %s11
    $region7: #{spatial_attention.1} parent=1 // loop_footer_branch
      %10 = sbr.rel target = $region3
    $region8: #{spatial_attention.1} parent=1 // loop_exit
      _
    %2081 = vsyncpa [#allocation5], 1
    %s2082 = scalar_lea.sflag [#allocation5], 1
    %2083 = vsyncpa %s2082, 1

</llo_original>
